<compile_context>
chip_gen: v5e
topology: v5e:2x2
jax: 0.10.0
libtpu: 0.0.40
codegen_flags: <defaults>
</compile_context>

<pallas_src>
import functools

import jax
import jax.numpy as jnp
from jax.experimental import pallas as pl
from jax.experimental.pallas import tpu as pltpu

LANE = 128
NEG_SLOPE = 0.2
MAX_TM = 256                      # fills v6e/v7x 256-wide MXU; harmless on v5e (128-wide)
_VMEM_LIMIT = 32 * 1024 * 1024    # > v5e 16 MiB scoped default, leaves headroom on v7x


def _rup(x, m):
    return (x + m - 1) // m * m


def _cdiv(a, b):
    return -(-a // b)


def _pick_tm(m_rows, max_tm=MAX_TM):
    """Row-tile size: as big as max_tm allows, but keep >=2 grid steps whenever there
    is more than one sublane tile of work so v7x's two TensorCores have something to
    split and the pipeline has something to overlap."""
    t = min(max_tm, _rup(m_rows, 8))
    steps = _cdiv(m_rows, t)
    if steps == 1 and t > 8:
        steps = 2
    return _rup(_cdiv(m_rows, steps), 8)


# ----------------------- Buffered(1) probe for resident weights -------------------------

def _probe_buffered_specs():
    """Single-buffering (pipeline_mode=pl.Buffered(1)) for grid-invariant operands saves
    VMEM (double-buffering a constant weight is pure waste).  Probe once whether the
    installed Pallas accepts it; otherwise fall back to plain BlockSpecs."""
    try:
        def _copy(x_ref, o_ref):
            o_ref[...] = x_ref[...]

        spec = pl.BlockSpec((8, LANE), lambda i: (0, 0), pipeline_mode=pl.Buffered(1))
        x = jnp.arange(8 * LANE, dtype=jnp.float32).reshape(8, LANE)
        y = pl.pallas_call(
            _copy,
            out_shape=jax.ShapeDtypeStruct((8, LANE), jnp.float32),
            grid=(1,),
            in_specs=[spec],
            out_specs=pl.BlockSpec((8, LANE), lambda i: (0, 0)),
        )(x)
        return bool(jnp.all(jax.block_until_ready(y) == x))
    except Exception:  # pragma: no cover - depends on installed Pallas version
        return False


_BUFFERED_OK = _probe_buffered_specs()


def _const_spec(shape):
    """BlockSpec for an operand resident (same block) across all grid steps."""
    index_map = lambda i: (0,) * len(shape)
    if _BUFFERED_OK:
        return pl.BlockSpec(shape, index_map, pipeline_mode=pl.Buffered(1))
    return pl.BlockSpec(shape, index_map)


# ----------------------------- conv combo kernel ---------------------------------------

def _conv_combo_kernel(x_ref, w_ref, scale_ref, shift_ref, o_ref):
    # x_ref: (tm, 4*C_in_pad) im2col rows; w_ref: (4*C_in_pad, C_out_pad) = [W0;W1;W2;W3].
    acc = jnp.dot(x_ref[...], w_ref[...], preferred_element_type=jnp.float32)
    y = acc * scale_ref[...] + shift_ref[...]            # conv bias + folded BatchNorm
    o_ref[...] = jnp.where(y > 0, y, NEG_SLOPE * y).astype(o_ref.dtype)   # LeakyReLU(0.2)


def conv1d_combo(patches, w4, scale, shift):
    """(M, 4*C_in_pad) bf16 im2col rows -> (M, C_out_pad) bf16.  M = N*L_out (batch folded)."""
    m, k4 = patches.shape
    cpo = w4.shape[1]
    tm = _pick_tm(m)
    m_pad = _rup(m, tm)
    patches = jnp.pad(patches, ((0, m_pad - m), (0, 0)))
    out = pl.pallas_call(
        _conv_combo_kernel,
        out_shape=jax.ShapeDtypeStruct((m_pad, cpo), jnp.bfloat16),
        grid=(m_pad // tm,),
        in_specs=[
            pl.BlockSpec((tm, k4), lambda i: (i, 0)),
            _const_spec((k4, cpo)),
            _const_spec((1, cpo)),
            _const_spec((1, cpo)),
        ],
        out_specs=pl.BlockSpec((tm, cpo), lambda i: (i, 0)),
        compiler_params=pltpu.CompilerParams(
            dimension_semantics=("parallel",),
            vmem_limit_bytes=_VMEM_LIMIT),
    )(patches, w4, scale, shift)
    return out[:m]


# ----------------------------- fused MLP kernel -----------------------------------------

def _fused_mlp_kernel(*refs, n_layers, acts):
    # refs = [h, w0, b0, w1, b1, ..., w_{n-1}, b_{n-1}, out]
    h_ref, o_ref = refs[0], refs[-1]
    h = h_ref[...]                                            # bf16 row tile
    for li in range(n_layers):
        w_ref, b_ref = refs[1 + 2 * li], refs[2 + 2 * li]
        y = jnp.dot(h, w_ref[...], preferred_element_type=jnp.float32)
        y = y + b_ref[...]
        if acts[li]:
            y = jnp.where(y > 0, y, NEG_SLOPE * y)            # LeakyReLU(0.2)
            h = y.astype(jnp.bfloat16)                        # carry bf16 between layers
        else:
            h = y                                             # final nn.Linear stays f32
    o_ref[...] = h.astype(o_ref.dtype)


def fused_mlp(h, mlp_layers):
    """All LinearCombo layers + final nn.Linear in ONE pallas_call (the running
    activation never leaves VMEM).  h: (M, K0_pad) bf16; weights (Kin_pad, Kout_pad)
    bf16 with constant index maps (single-buffered when supported); biases f32."""
    m, k0 = h.shape
    tm = _pick_tm(m)
    m_pad = _rup(m, tm)
    h = jnp.pad(h, ((0, m_pad - m), (0, 0)))
    n_out = mlp_layers[-1]["w"].shape[1]
    acts = tuple(i < len(mlp_layers) - 1 for i in range(len(mlp_layers)))
    kernel = functools.partial(_fused_mlp_kernel, n_layers=len(mlp_layers), acts=acts)

    in_specs = [pl.BlockSpec((tm, k0), lambda i: (i, 0))]
    args = [h]
    for p in mlp_layers:
        in_specs.append(_const_spec(p["w"].shape))
        in_specs.append(_const_spec(p["b"].shape))
        args += [p["w"], p["b"]]

    # TODO(synk): for very wide crt_layers add a K-tiled grid axis with a VMEM accumulator
    #             on the first layer; at these widths everything fits a single block.
    out = pl.pallas_call(
        kernel,
        out_shape=jax.ShapeDtypeStruct((m_pad, n_out), jnp.float32),
        grid=(m_pad // tm,),
        in_specs=in_specs,
        out_specs=pl.BlockSpec((tm, n_out), lambda i: (i, 0)),
        compiler_params=pltpu.CompilerParams(
            dimension_semantics=("parallel",),
            vmem_limit_bytes=_VMEM_LIMIT),
    )(*args)
    return out[:m]


# ----------------------------- one-time weight preparation ------------------------------

def prepare_params(params):
    """One-time weight prep (transposes, pads, BN fold, flatten-permutation folding).
    Hoisted out of the per-call forward so none of it runs on the jitted critical path.
    Returns an arrays-only pytree `prepped` plus a static python `meta` dict (bind the
    latter with functools.partial so it stays static under jit)."""
    conv_p, c_last = [], None
    for p in params["conv"]:
        c_out, c_in, k = p["w"].shape
        assert k == 4
        cpi, cpo = _rup(c_in, LANE), _rup(c_out, LANE)
        wt = jnp.transpose(p["w"], (2, 1, 0))                  # (4, c_in, c_out): W_t[ci, co]
        wt = jnp.pad(wt, ((0, 0), (0, cpi - c_in), (0, cpo - c_out)))
        scale = p["gamma"] / jnp.sqrt(p["var"] + 1e-5)         # fold BatchNorm (eval)
        shift = (p["b"] - p["mean"]) * scale + p["beta"]
        conv_p.append({
            "w": wt.reshape(4 * cpi, cpo).astype(jnp.bfloat16),   # [W0;W1;W2;W3] on K
            "scale": jnp.pad(scale, (0, cpo - c_out)).reshape(1, cpo),
            "shift": jnp.pad(shift, (0, cpo - c_out)).reshape(1, cpo),
        })
        c_last = c_out

    mlp_params = list(params["mlp"]) + [params["final"]]
    l_last = mlp_params[0]["w"].shape[1] // c_last             # m_features = c_last * l_last
    k0 = l_last * c_last                                       # true (un-padded) flatten width
    k0_pad = _rup(k0, LANE)

    mlp_p = []
    for idx, p in enumerate(mlp_params):
        f_out, f_in = p["w"].shape
        fo_pad = _rup(f_out, LANE)
        if idx == 0:
            # Fold PyTorch's channel-major nn.Flatten permutation into the weight so the
            # channel-last conv output (true channels only) feeds the MLP directly:
            #   Wp[l*C + c, :] = W[:, c*L + l]
            wp = p["w"].T.reshape(c_last, l_last, f_out).transpose(1, 0, 2).reshape(k0, f_out)
            wp = jnp.pad(wp, ((0, k0_pad - k0), (0, fo_pad - f_out)))
        else:
            fi_pad = _rup(f_in, LANE)
            wp = jnp.pad(p["w"].T, ((0, fi_pad - f_in), (0, fo_pad - f_out)))
        mlp_p.append({
            "w": wp.astype(jnp.bfloat16),
            "b": jnp.pad(p["b"], (0, fo_pad - f_out)).reshape(1, fo_pad).astype(jnp.float32),
        })

    prepped = {"conv": conv_p, "mlp": mlp_p}
    meta = {"c_last": c_last, "n_critics": params["final"]["w"].shape[0]}
    return prepped, meta


# ----------------------------- forward pass (wrapper = layout only) ---------------------

def critics1d_forward(x, prepped, meta):
    """x: (N, C, H) float32 -> (N, n_critics) float32."""
    n, c_in0, _ = x.shape
    cpi0 = prepped["conv"][0]["w"].shape[0] // 4

    # NCH -> channel-last, lane-padded, bf16 (one-time input layout prep).
    h = jnp.transpose(x, (0, 2, 1))
    h = jnp.pad(h, ((0, 0), (0, 0), (0, cpi0 - c_in0))).astype(jnp.bfloat16)

    # Conv1DCombo stack: batch-folded, lane-aligned im2col matmuls (one call per layer).
    for p in prepped["conv"]:
        cpi = h.shape[2]
        assert 4 * cpi == p["w"].shape[0]
        cpo = p["w"].shape[1]
        l_in = h.shape[1]
        l_out = l_in // 2
        xp = jnp.pad(h, ((0, 0), (1, 1), (0, 0)))               # Conv1d padding = 1
        pairs = xp.reshape(n, l_out + 1, 2 * cpi)                # row j = [x[2j] | x[2j+1]]
        patches = jnp.concatenate([pairs[:, :l_out], pairs[:, 1:]], axis=-1)
        rows = conv1d_combo(patches.reshape(n * l_out, 4 * cpi),
                            p["w"], p["scale"], p["shift"])
        h = rows.reshape(n, l_out, cpo)

    # nn.Flatten: slice off the channel padding FIRST (so the first MLP matmul contracts
    # over the true m_features); the channel-major permutation is already folded into
    # the first MLP weight in prepare_params().
    c_last = meta["c_last"]
    l_last = h.shape[1]
    k0 = l_last * c_last
    k0_pad = prepped["mlp"][0]["w"].shape[0]
    h_flat = h[:, :, :c_last].reshape(n, k0)
    h_flat = jnp.pad(h_flat, ((0, 0), (0, k0_pad - k0)))

    out = fused_mlp(h_flat, prepped["mlp"])
    return out[:, :meta["n_critics"]]


# ----------------------------- pure-JAX reference (f32) --------------------------------

def _reference_forward(x, params):
    h = x
    for p in params["conv"]:
        _n, _c, l_ = h.shape
        hp = jnp.pad(h, ((0, 0), (0, 0), (1, 1)))
        l_out = l_ // 2
        idx = jnp.arange(l_out)[:, None] * 2 + jnp.arange(4)[None, :]
        patches = hp[:, :, idx]                                # (N, C, L_out, 4)
        y = jnp.einsum('nclk,ock->nol', patches, p["w"]) + p["b"][None, :, None]
        scale = p["gamma"] / jnp.sqrt(p["var"] + 1e-5)
        y = (y - p["mean"][None, :, None]) * scale[None, :, None] + p["beta"][None, :, None]
        h = jnp.where(y > 0, y, NEG_SLOPE * y)
    h = h.reshape(h.shape[0], -1)
    for p in params["mlp"]:
        h = h @ p["w"].T + p["b"]
        h = jnp.where(h > 0, h, NEG_SLOPE * h)
    p = params["final"]
    return h @ p["w"].T + p["b"]


# ----------------------------- deterministic parameter init ----------------------------

def init_params(key, in_channels, in_features, n_critics, conv_channels, crt_layers):
    n_l = len(conv_channels)
    m_features = in_features // 2 ** n_l * conv_channels[-1]

    params = {"conv": [], "mlp": [], "final": None}
    keys = iter(jax.random.split(key, 64))

    # Conv1DCombo layers: Conv1d(k=4,s=2,p=1) + BatchNorm1d + LeakyReLU(0.2)
    for c_in, c_out in zip([in_channels] + conv_channels[:-1], conv_channels):
        params["conv"].append({
            "w": 0.1 * jax.random.normal(next(keys), (c_out, c_in, 4), jnp.float32),
            "b": 0.1 * jax.random.normal(next(keys), (c_out,), jnp.float32),
            "gamma": 1.0 + 0.1 * jax.random.normal(next(keys), (c_out,), jnp.float32),
            "beta": 0.1 * jax.random.normal(next(keys), (c_out,), jnp.float32),
            "mean": 0.1 * jax.random.normal(next(keys), (c_out,), jnp.float32),
            "var": 1.0 + 0.1 * jax.random.uniform(next(keys), (c_out,), jnp.float32),
        })

    # MLP(m_features, crt_layers[-1], crt_layers[:-1]) — all layers are LinearCombo.
    widths_in = [m_features] + crt_layers[:-1]
    widths_out = crt_layers[:-1] + [crt_layers[-1]]
    for f_in, f_out in zip(widths_in, widths_out):
        params["mlp"].append({
            "w": 0.1 * jax.random.normal(next(keys), (f_out, f_in), jnp.float32),
            "b": 0.1 * jax.random.normal(next(keys), (f_out,), jnp.float32),
        })

    # Final nn.Linear(crt_layers[-1], n_critics)
    params["final"] = {
        "w": 0.1 * jax.random.normal(next(keys), (n_critics, crt_layers[-1]), jnp.float32),
        "b": 0.1 * jax.random.normal(next(keys), (n_critics,), jnp.float32),
    }
    return params, m_features


# ----------------------------- demo ------------------------------------------------------

if __name__ == "__main__":
    # Small, shape-consistent config:
    #   in_channels=4, in_features=16, conv_channels=[8, 16] -> m_features = 16//4 * 16 = 64
    #   crt_layers=[32, 32], n_critics=4
    batch = 2
    in_channels, in_features = 4, 16
    conv_channels = [8, 16]
    crt_layers = [32, 32]
    n_critics = 4

    key = jax.random.PRNGKey(0)
    k_x, k_p = jax.random.split(key)
    x = jax.random.normal(k_x, (batch, in_channels, in_features), jnp.float32)  # (N, C, H)

    params, m_features = init_params(
        k_p, in_channels, in_features, n_critics, conv_channels, crt_layers)

    # One-time weight preparation, hoisted out of the jitted forward.
    prepped, meta = prepare_params(params)
    fwd = jax.jit(functools.partial(critics1d_forward, meta=meta))

    out = jax.block_until_ready(fwd(x, prepped))
    assert out.shape == (batch, n_critics), out.shape
    assert bool(jnp.all(jnp.isfinite(out)))

    # Relaxed tolerance: kernels use bf16 MXU inputs with f32 accumulation.
    ref = _reference_forward(x, params)
    assert bool(jnp.allclose(out, ref, atol=3e-2, rtol=3e-2)), float(jnp.max(jnp.abs(out - ref)))

    print("KERNEL_OK")
</pallas_src>

<mosaic_0001>
module attributes {stable_mosaic.version = 11 : i64} {
  func.func @_copy(%arg0: i32, %arg1: memref<8x128xf32, #tpu.memory_space<vmem>>, %arg2: memref<8x128xf32, #tpu.memory_space<vmem>>) attributes {dimension_semantics = [#tpu.dimension_semantics<arbitrary>], iteration_bounds = array<i64: 1>, scalar_prefetch = 0 : i64, scratch_operands = 0 : i64, tpu.core_type = #tpu.core_type<tc>, window_params = [{pipeline_mode = #tpu.pipeline_mode<synchronous>, transform_indices = @transform_0, window_bounds = array<i64: 8, 128>}, {pipeline_mode = #tpu.pipeline_mode<synchronous>, transform_indices = @transform_1, window_bounds = array<i64: 8, 128>}]} {
    %c0 = arith.constant 0 : index
    %c0_0 = arith.constant 0 : index
    %0 = vector.load %arg1[%c0, %c0_0] : memref<8x128xf32, #tpu.memory_space<vmem>>, vector<8x128xf32>
    %c0_1 = arith.constant 0 : index
    %c0_2 = arith.constant 0 : index
    %1 = vector.load %arg2[%c0_1, %c0_2] : memref<8x128xf32, #tpu.memory_space<vmem>>, vector<8x128xf32>
    tpu.vector_store %arg2[%c0_1, %c0_2], %0 {strides = array<i32>} : memref<8x128xf32, #tpu.memory_space<vmem>>, vector<8x128xf32>,
    return
  }
  func.func @transform_0(%arg0: i32) -> (i32, i32) {
    %c0_i32 = arith.constant 0 : i32
    %c0_i32_0 = arith.constant 0 : i32
    %c0_i32_1 = arith.constant 0 : i32
    return %c0_i32, %c0_i32_0 : i32, i32
  }
  func.func @transform_1(%arg0: i32) -> (i32, i32) {
    %c0_i32 = arith.constant 0 : i32
    %c0_i32_0 = arith.constant 0 : i32
    %c0_i32_1 = arith.constant 0 : i32
    return %c0_i32, %c0_i32_0 : i32, i32
  }
}

module attributes {stable_mosaic.version = 11 : i64} {
  func.func @_conv_combo_kernel(%arg0: i32, %arg1: memref<8x512xbf16, #tpu.memory_space<vmem>>, %arg2: memref<512x128xbf16, #tpu.memory_space<vmem>>, %arg3: memref<1x128xf32, #tpu.memory_space<vmem>>, %arg4: memref<1x128xf32, #tpu.memory_space<vmem>>, %arg5: memref<8x128xbf16, #tpu.memory_space<vmem>>) attributes {dimension_semantics = [#tpu.dimension_semantics<parallel>], iteration_bounds = array<i64: 1>, scalar_prefetch = 0 : i64, scratch_operands = 0 : i64, tpu.core_type = #tpu.core_type<tc>, window_params = [{transform_indices = @transform_0, window_bounds = array<i64: 8, 512>}, {pipeline_mode = #tpu.pipeline_mode<synchronous>, transform_indices = @transform_1, window_bounds = array<i64: 512, 128>}, {pipeline_mode = #tpu.pipeline_mode<synchronous>, transform_indices = @transform_2, window_bounds = array<i64: 1, 128>}, {pipeline_mode = #tpu.pipeline_mode<synchronous>, transform_indices = @transform_3, window_bounds = array<i64: 1, 128>}, {transform_indices = @transform_4, window_bounds = array<i64: 8, 128>}]} {
    %c0 = arith.constant 0 : index
    %c0_0 = arith.constant 0 : index
    %0 = vector.load %arg1[%c0, %c0_0] : memref<8x512xbf16, #tpu.memory_space<vmem>>, vector<8x512xbf16>
    %c0_1 = arith.constant 0 : index
    %c0_2 = arith.constant 0 : index
    %1 = vector.load %arg2[%c0_1, %c0_2] : memref<512x128xbf16, #tpu.memory_space<vmem>>, vector<512x128xbf16>
    %cst = arith.constant dense<0.000000e+00> : vector<8x128xf32>
    %2 = tpu.matmul %0, %1, %cst {dimension_numbers = #tpu.dot_dimension_numbers<[1], [0], [0], [1], [0, 0, 1, 1], [], []>} : vector<8x512xbf16>, vector<512x128xbf16>, vector<8x128xf32> -> vector<8x128xf32>
    %c0_3 = arith.constant 0 : index
    %c0_4 = arith.constant 0 : index
    %3 = vector.load %arg3[%c0_3, %c0_4] : memref<1x128xf32, #tpu.memory_space<vmem>>, vector<1x128xf32>
    %4 = vector.broadcast %3 : vector<1x128xf32> to vector<8x128xf32>
    %5 = arith.mulf %2, %4 : vector<8x128xf32>
    %c0_5 = arith.constant 0 : index
    %c0_6 = arith.constant 0 : index
    %6 = vector.load %arg4[%c0_5, %c0_6] : memref<1x128xf32, #tpu.memory_space<vmem>>, vector<1x128xf32>
    %7 = vector.broadcast %6 : vector<1x128xf32> to vector<8x128xf32>
    %8 = arith.addf %5, %7 : vector<8x128xf32>
    %cst_7 = arith.constant 0.000000e+00 : f32
    %9 = vector.broadcast %cst_7 : f32 to vector<8x128xf32>
    %10 = arith.cmpf ogt, %8, %9 : vector<8x128xf32>
    %cst_8 = arith.constant 2.000000e-01 : f32
    %11 = vector.broadcast %cst_8 : f32 to vector<8x128xf32>
    %12 = arith.mulf %11, %8 : vector<8x128xf32>
    %13 = arith.select %10, %8, %12 : vector<8x128xi1>, vector<8x128xf32>
    %14 = arith.truncf %13 : vector<8x128xf32> to vector<8x128xbf16>
    %c0_9 = arith.constant 0 : index
    %c0_10 = arith.constant 0 : index
    %15 = vector.load %arg5[%c0_9, %c0_10] : memref<8x128xbf16, #tpu.memory_space<vmem>>, vector<8x128xbf16>
    tpu.vector_store %arg5[%c0_9, %c0_10], %14 {strides = array<i32>} : memref<8x128xbf16, #tpu.memory_space<vmem>>, vector<8x128xbf16>,
    return
  }
  func.func @transform_0(%arg0: i32) -> (i32, i32) {
    %c0_i32 = arith.constant 0 : i32
    %c0_i32_0 = arith.constant 0 : i32
    return %arg0, %c0_i32 : i32, i32
  }
  func.func @transform_1(%arg0: i32) -> (i32, i32) {
    %c0_i32 = arith.constant 0 : i32
    %c0_i32_0 = arith.constant 0 : i32
    %c0_i32_1 = arith.constant 0 : i32
    return %c0_i32, %c0_i32_0 : i32, i32
  }
  func.func @transform_2(%arg0: i32) -> (i32, i32) {
    %c0_i32 = arith.constant 0 : i32
    %c0_i32_0 = arith.constant 0 : i32
    %c0_i32_1 = arith.constant 0 : i32
    return %c0_i32, %c0_i32_0 : i32, i32
  }
  func.func @transform_3(%arg0: i32) -> (i32, i32) {
    %c0_i32 = arith.constant 0 : i32
    %c0_i32_0 = arith.constant 0 : i32
    %c0_i32_1 = arith.constant 0 : i32
    return %c0_i32, %c0_i32_0 : i32, i32
  }
  func.func @transform_4(%arg0: i32) -> (i32, i32) {
    %c0_i32 = arith.constant 0 : i32
    %c0_i32_0 = arith.constant 0 : i32
    return %arg0, %c0_i32 : i32, i32
  }
}

module attributes {stable_mosaic.version = 11 : i64} {
  func.func @_conv_combo_kernel(%arg0: i32, %arg1: memref<8x512xbf16, #tpu.memory_space<vmem>>, %arg2: memref<512x128xbf16, #tpu.memory_space<vmem>>, %arg3: memref<1x128xf32, #tpu.memory_space<vmem>>, %arg4: memref<1x128xf32, #tpu.memory_space<vmem>>, %arg5: memref<8x128xbf16, #tpu.memory_space<vmem>>) attributes {dimension_semantics = [#tpu.dimension_semantics<parallel>], iteration_bounds = array<i64: 2>, scalar_prefetch = 0 : i64, scratch_operands = 0 : i64, tpu.core_type = #tpu.core_type<tc>, window_params = [{transform_indices = @transform_0, window_bounds = array<i64: 8, 512>}, {pipeline_mode = #tpu.pipeline_mode<synchronous>, transform_indices = @transform_1, window_bounds = array<i64: 512, 128>}, {pipeline_mode = #tpu.pipeline_mode<synchronous>, transform_indices = @transform_2, window_bounds = array<i64: 1, 128>}, {pipeline_mode = #tpu.pipeline_mode<synchronous>, transform_indices = @transform_3, window_bounds = array<i64: 1, 128>}, {transform_indices = @transform_4, window_bounds = array<i64: 8, 128>}]} {
    %c0 = arith.constant 0 : index
    %c0_0 = arith.constant 0 : index
    %0 = vector.load %arg1[%c0, %c0_0] : memref<8x512xbf16, #tpu.memory_space<vmem>>, vector<8x512xbf16>
    %c0_1 = arith.constant 0 : index
    %c0_2 = arith.constant 0 : index
    %1 = vector.load %arg2[%c0_1, %c0_2] : memref<512x128xbf16, #tpu.memory_space<vmem>>, vector<512x128xbf16>
    %cst = arith.constant dense<0.000000e+00> : vector<8x128xf32>
    %2 = tpu.matmul %0, %1, %cst {dimension_numbers = #tpu.dot_dimension_numbers<[1], [0], [0], [1], [0, 0, 1, 1], [], []>} : vector<8x512xbf16>, vector<512x128xbf16>, vector<8x128xf32> -> vector<8x128xf32>
    %c0_3 = arith.constant 0 : index
    %c0_4 = arith.constant 0 : index
    %3 = vector.load %arg3[%c0_3, %c0_4] : memref<1x128xf32, #tpu.memory_space<vmem>>, vector<1x128xf32>
    %4 = vector.broadcast %3 : vector<1x128xf32> to vector<8x128xf32>
    %5 = arith.mulf %2, %4 : vector<8x128xf32>
    %c0_5 = arith.constant 0 : index
    %c0_6 = arith.constant 0 : index
    %6 = vector.load %arg4[%c0_5, %c0_6] : memref<1x128xf32, #tpu.memory_space<vmem>>, vector<1x128xf32>
    %7 = vector.broadcast %6 : vector<1x128xf32> to vector<8x128xf32>
    %8 = arith.addf %5, %7 : vector<8x128xf32>
    %cst_7 = arith.constant 0.000000e+00 : f32
    %9 = vector.broadcast %cst_7 : f32 to vector<8x128xf32>
    %10 = arith.cmpf ogt, %8, %9 : vector<8x128xf32>
    %cst_8 = arith.constant 2.000000e-01 : f32
    %11 = vector.broadcast %cst_8 : f32 to vector<8x128xf32>
    %12 = arith.mulf %11, %8 : vector<8x128xf32>
    %13 = arith.select %10, %8, %12 : vector<8x128xi1>, vector<8x128xf32>
    %14 = arith.truncf %13 : vector<8x128xf32> to vector<8x128xbf16>
    %c0_9 = arith.constant 0 : index
    %c0_10 = arith.constant 0 : index
    %15 = vector.load %arg5[%c0_9, %c0_10] : memref<8x128xbf16, #tpu.memory_space<vmem>>, vector<8x128xbf16>
    tpu.vector_store %arg5[%c0_9, %c0_10], %14 {strides = array<i32>} : memref<8x128xbf16, #tpu.memory_space<vmem>>, vector<8x128xbf16>,
    return
  }
  func.func @transform_0(%arg0: i32) -> (i32, i32) {
    %c0_i32 = arith.constant 0 : i32
    %c0_i32_0 = arith.constant 0 : i32
    return %arg0, %c0_i32 : i32, i32
  }
  func.func @transform_1(%arg0: i32) -> (i32, i32) {
    %c0_i32 = arith.constant 0 : i32
    %c0_i32_0 = arith.constant 0 : i32
    %c0_i32_1 = arith.constant 0 : i32
    return %c0_i32, %c0_i32_0 : i32, i32
  }
  func.func @transform_2(%arg0: i32) -> (i32, i32) {
    %c0_i32 = arith.constant 0 : i32
    %c0_i32_0 = arith.constant 0 : i32
    %c0_i32_1 = arith.constant 0 : i32
    return %c0_i32, %c0_i32_0 : i32, i32
  }
  func.func @transform_3(%arg0: i32) -> (i32, i32) {
    %c0_i32 = arith.constant 0 : i32
    %c0_i32_0 = arith.constant 0 : i32
    %c0_i32_1 = arith.constant 0 : i32
    return %c0_i32, %c0_i32_0 : i32, i32
  }
  func.func @transform_4(%arg0: i32) -> (i32, i32) {
    %c0_i32 = arith.constant 0 : i32
    %c0_i32_0 = arith.constant 0 : i32
    return %arg0, %c0_i32 : i32, i32
  }
}

module attributes {stable_mosaic.version = 11 : i64} {
  func.func @_fused_mlp_kernel(%arg0: i32, %arg1: memref<8x128xbf16, #tpu.memory_space<vmem>>, %arg2: memref<128x128xbf16, #tpu.memory_space<vmem>>, %arg3: memref<1x128xf32, #tpu.memory_space<vmem>>, %arg4: memref<128x128xbf16, #tpu.memory_space<vmem>>, %arg5: memref<1x128xf32, #tpu.memory_space<vmem>>, %arg6: memref<128x128xbf16, #tpu.memory_space<vmem>>, %arg7: memref<1x128xf32, #tpu.memory_space<vmem>>, %arg8: memref<8x128xf32, #tpu.memory_space<vmem>>) attributes {dimension_semantics = [#tpu.dimension_semantics<parallel>], iteration_bounds = array<i64: 1>, scalar_prefetch = 0 : i64, scratch_operands = 0 : i64, tpu.core_type = #tpu.core_type<tc>, window_params = [{transform_indices = @transform_0, window_bounds = array<i64: 8, 128>}, {pipeline_mode = #tpu.pipeline_mode<synchronous>, transform_indices = @transform_1, window_bounds = array<i64: 128, 128>}, {pipeline_mode = #tpu.pipeline_mode<synchronous>, transform_indices = @transform_2, window_bounds = array<i64: 1, 128>}, {pipeline_mode = #tpu.pipeline_mode<synchronous>, transform_indices = @transform_3, window_bounds = array<i64: 128, 128>}, {pipeline_mode = #tpu.pipeline_mode<synchronous>, transform_indices = @transform_4, window_bounds = array<i64: 1, 128>}, {pipeline_mode = #tpu.pipeline_mode<synchronous>, transform_indices = @transform_5, window_bounds = array<i64: 128, 128>}, {pipeline_mode = #tpu.pipeline_mode<synchronous>, transform_indices = @transform_6, window_bounds = array<i64: 1, 128>}, {transform_indices = @transform_7, window_bounds = array<i64: 8, 128>}]} {
    %c0 = arith.constant 0 : index
    %c0_0 = arith.constant 0 : index
    %0 = vector.load %arg1[%c0, %c0_0] : memref<8x128xbf16, #tpu.memory_space<vmem>>, vector<8x128xbf16>
    %c0_1 = arith.constant 0 : index
    %c0_2 = arith.constant 0 : index
    %1 = vector.load %arg2[%c0_1, %c0_2] : memref<128x128xbf16, #tpu.memory_space<vmem>>, vector<128x128xbf16>
    %cst = arith.constant dense<0.000000e+00> : vector<8x128xf32>
    %2 = tpu.matmul %0, %1, %cst {dimension_numbers = #tpu.dot_dimension_numbers<[1], [0], [0], [1], [0, 0, 1, 1], [], []>} : vector<8x128xbf16>, vector<128x128xbf16>, vector<8x128xf32> -> vector<8x128xf32>
    %c0_3 = arith.constant 0 : index
    %c0_4 = arith.constant 0 : index
    %3 = vector.load %arg3[%c0_3, %c0_4] : memref<1x128xf32, #tpu.memory_space<vmem>>, vector<1x128xf32>
    %4 = vector.broadcast %3 : vector<1x128xf32> to vector<8x128xf32>
    %5 = arith.addf %2, %4 : vector<8x128xf32>
    %cst_5 = arith.constant 0.000000e+00 : f32
    %6 = vector.broadcast %cst_5 : f32 to vector<8x128xf32>
    %7 = arith.cmpf ogt, %5, %6 : vector<8x128xf32>
    %cst_6 = arith.constant 2.000000e-01 : f32
    %8 = vector.broadcast %cst_6 : f32 to vector<8x128xf32>
    %9 = arith.mulf %8, %5 : vector<8x128xf32>
    %10 = arith.select %7, %5, %9 : vector<8x128xi1>, vector<8x128xf32>
    %11 = arith.truncf %10 : vector<8x128xf32> to vector<8x128xbf16>
    %c0_7 = arith.constant 0 : index
    %c0_8 = arith.constant 0 : index
    %12 = vector.load %arg4[%c0_7, %c0_8] : memref<128x128xbf16, #tpu.memory_space<vmem>>, vector<128x128xbf16>
    %cst_9 = arith.constant dense<0.000000e+00> : vector<8x128xf32>
    %13 = tpu.matmul %11, %12, %cst_9 {dimension_numbers = #tpu.dot_dimension_numbers<[1], [0], [0], [1], [0, 0, 1, 1], [], []>} : vector<8x128xbf16>, vector<128x128xbf16>, vector<8x128xf32> -> vector<8x128xf32>
    %c0_10 = arith.constant 0 : index
    %c0_11 = arith.constant 0 : index
    %14 = vector.load %arg5[%c0_10, %c0_11] : memref<1x128xf32, #tpu.memory_space<vmem>>, vector<1x128xf32>
    %15 = vector.broadcast %14 : vector<1x128xf32> to vector<8x128xf32>
    %16 = arith.addf %13, %15 : vector<8x128xf32>
    %cst_12 = arith.constant 0.000000e+00 : f32
    %17 = vector.broadcast %cst_12 : f32 to vector<8x128xf32>
    %18 = arith.cmpf ogt, %16, %17 : vector<8x128xf32>
    %cst_13 = arith.constant 2.000000e-01 : f32
    %19 = vector.broadcast %cst_13 : f32 to vector<8x128xf32>
    %20 = arith.mulf %19, %16 : vector<8x128xf32>
    %21 = arith.select %18, %16, %20 : vector<8x128xi1>, vector<8x128xf32>
    %22 = arith.truncf %21 : vector<8x128xf32> to vector<8x128xbf16>
    %c0_14 = arith.constant 0 : index
    %c0_15 = arith.constant 0 : index
    %23 = vector.load %arg6[%c0_14, %c0_15] : memref<128x128xbf16, #tpu.memory_space<vmem>>, vector<128x128xbf16>
    %cst_16 = arith.constant dense<0.000000e+00> : vector<8x128xf32>
    %24 = tpu.matmul %22, %23, %cst_16 {dimension_numbers = #tpu.dot_dimension_numbers<[1], [0], [0], [1], [0, 0, 1, 1], [], []>} : vector<8x128xbf16>, vector<128x128xbf16>, vector<8x128xf32> -> vector<8x128xf32>
    %c0_17 = arith.constant 0 : index
    %c0_18 = arith.constant 0 : index
    %25 = vector.load %arg7[%c0_17, %c0_18] : memref<1x128xf32, #tpu.memory_space<vmem>>, vector<1x128xf32>
    %26 = vector.broadcast %25 : vector<1x128xf32> to vector<8x128xf32>
    %27 = arith.addf %24, %26 : vector<8x128xf32>
    %c0_19 = arith.constant 0 : index
    %c0_20 = arith.constant 0 : index
    %28 = vector.load %arg8[%c0_19, %c0_20] : memref<8x128xf32, #tpu.memory_space<vmem>>, vector<8x128xf32>
    tpu.vector_store %arg8[%c0_19, %c0_20], %27 {strides = array<i32>} : memref<8x128xf32, #tpu.memory_space<vmem>>, vector<8x128xf32>,
    return
  }
  func.func @transform_0(%arg0: i32) -> (i32, i32) {
    %c0_i32 = arith.constant 0 : i32
    %c0_i32_0 = arith.constant 0 : i32
    return %arg0, %c0_i32 : i32, i32
  }
  func.func @transform_1(%arg0: i32) -> (i32, i32) {
    %c0_i32 = arith.constant 0 : i32
    %c0_i32_0 = arith.constant 0 : i32
    %c0_i32_1 = arith.constant 0 : i32
    return %c0_i32, %c0_i32_0 : i32, i32
  }
  func.func @transform_2(%arg0: i32) -> (i32, i32) {
    %c0_i32 = arith.constant 0 : i32
    %c0_i32_0 = arith.constant 0 : i32
    %c0_i32_1 = arith.constant 0 : i32
    return %c0_i32, %c0_i32_0 : i32, i32
  }
  func.func @transform_3(%arg0: i32) -> (i32, i32) {
    %c0_i32 = arith.constant 0 : i32
    %c0_i32_0 = arith.constant 0 : i32
    %c0_i32_1 = arith.constant 0 : i32
    return %c0_i32, %c0_i32_0 : i32, i32
  }
  func.func @transform_4(%arg0: i32) -> (i32, i32) {
    %c0_i32 = arith.constant 0 : i32
    %c0_i32_0 = arith.constant 0 : i32
    %c0_i32_1 = arith.constant 0 : i32
    return %c0_i32, %c0_i32_0 : i32, i32
  }
  func.func @transform_5(%arg0: i32) -> (i32, i32) {
    %c0_i32 = arith.constant 0 : i32
    %c0_i32_0 = arith.constant 0 : i32
    %c0_i32_1 = arith.constant 0 : i32
    return %c0_i32, %c0_i32_0 : i32, i32
  }
  func.func @transform_6(%arg0: i32) -> (i32, i32) {
    %c0_i32 = arith.constant 0 : i32
    %c0_i32_0 = arith.constant 0 : i32
    %c0_i32_1 = arith.constant 0 : i32
    return %c0_i32, %c0_i32_0 : i32, i32
  }
  func.func @transform_7(%arg0: i32) -> (i32, i32) {
    %c0_i32 = arith.constant 0 : i32
    %c0_i32_0 = arith.constant 0 : i32
    return %arg0, %c0_i32 : i32, i32
  }
}

</mosaic_0001>

<llo_original>
// kernel: tpu_custom_call.1
$region0: #{tpu_custom_call.1}
  #allocation0 [shape = 'u32[]', space=smem, size = 0x4, offset = 0x4, fixed_abs, tag = 'smem constant byte address 0x4 - core index']
  #allocation1 [shape = 'u32[72,128]{1,0:T(1,128)}', space=vmem, size = 0x9000, scoped, tag = 'internal scratch']
  %s0 = inlined_call_operand.hbm [shape: f32[8,128], index: 0, kind: input, shape index: {}]
  %s1 = inlined_call_operand.hbm [shape: f32[8,128], index: 1, kind: output, shape index: {}]
  %s2 = sld [smem:[#allocation0]]
  $region18: #{tpu_custom_call.1} parent=0
    _
  %s4 = ssub.s32 1, %s2
  %s5 = scalar_select 0, %s4, %s2
  $region1: #{tpu_custom_call.1} parent=0
    #allocation2 [shape = 'u8[4096]{0}', space=vmem, size = 0x1000, scoped, tag = 'input window, operand 0, single buffered']
    #allocation3 [shape = 's32[1]{0}', space=sflag, size = 0x4, scoped, tag = 'scoped memory for tpu_custom_call.1']
    #allocation4 [shape = 's32[1]{0}', space=sflag, size = 0x4, scoped, tag = 'scoped memory for tpu_custom_call.1']
    #allocation5 [shape = 'u8[4096]{0}', space=vmem, size = 0x1000, scoped, tag = 'output window, operand 0, single buffered']
    %6 = vsyncpa [#allocation3], 0
    %7 = vsyncpa [#allocation4], 0
    // Predicated region
    $region2: #{tpu_custom_call.1} parent=1 // pred_check
      _
    $region3: #{tpu_custom_call.1} parent=1 // pred_check_branch
      %9 = sbr.rel (0) target = $region5
    $region4: #{tpu_custom_call.1} parent=1 // pred_region
      %11 = vsyncadd [#allocation3], 0
      %s13 = sshll.u32 %s0, 4
      %s14 = int_to_ptr.hbm [resolvable:$true] %s13
      %s15 = sshll.u32 [#allocation2], 4
      %s16 = int_to_ptr.vmem [resolvable:$true] %s15
      %18 = dma.hbm_to_vmem [thread:$0]  %s14, 128, %s16, [#allocation3]
    $region5: #{tpu_custom_call.1} parent=1 // pred_fallthru
      _
    // Predicated region
    $region6: #{tpu_custom_call.1} parent=1 // pred_check
      _
    $region7: #{tpu_custom_call.1} parent=1 // pred_check_branch
      %20 = sbr.rel (0) target = $region9
    $region8: #{tpu_custom_call.1} parent=1 // pred_region
      %22 = dma.done [#allocation3], 128
    $region9: #{tpu_custom_call.1} parent=1 // pred_fallthru
      _
    %v23 = vld [vmem:[#allocation2] sm:$0xff]
    %24 = vst [vmem:[#allocation5] sm:$0xff] %v23
    // Predicated region
    $region10: #{tpu_custom_call.1} parent=1 // pred_check
      _
    $region11: #{tpu_custom_call.1} parent=1 // pred_check_branch
      %26 = sbr.rel (0) target = $region13
    $region12: #{tpu_custom_call.1} parent=1 // pred_region
      %28 = vsyncadd [#allocation4], 0
      %s30 = sshll.u32 [#allocation5], 4
      %s31 = int_to_ptr.vmem [resolvable:$true] %s30
      %s32 = sshll.u32 %s1, 4
      %s33 = int_to_ptr.hbm [resolvable:$true] %s32
      %35 = dma.vmem_to_hbm [thread:$0]  %s31, 128, %s33, [#allocation4]
    $region13: #{tpu_custom_call.1} parent=1 // pred_fallthru
      _
    // Predicated region
    $region14: #{tpu_custom_call.1} parent=1 // pred_check
      _
    $region15: #{tpu_custom_call.1} parent=1 // pred_check_branch
      %37 = sbr.rel (0) target = $region17
    $region16: #{tpu_custom_call.1} parent=1 // pred_region
      %39 = dma.done [#allocation4], 128
    $region17: #{tpu_custom_call.1} parent=1 // pred_fallthru
      _
    %40 = vsyncpa [#allocation3], 1
    %41 = vsyncpa [#allocation4], 1

// kernel: critics1d_forward.4
$region0: #{critics1d_forward.4}
  #allocation0 [shape = 'u32[]', space=smem, size = 0x4, offset = 0x4, fixed_abs, tag = 'smem constant byte address 0x4 - core index']
  #allocation1 [shape = 'u32[72,128]{1,0:T(1,128)}', space=vmem, size = 0x9000, scoped, tag = 'internal scratch']
  %s0 = inlined_call_operand.vmem [shape: bf16[8,512], index: 0, kind: input, shape index: {}]
  %s1 = inlined_call_operand.hbm [shape: bf16[512,128], index: 1, kind: input, shape index: {}]
  %s2 = inlined_call_operand.vmem [shape: f32[1,128], index: 2, kind: input, shape index: {}]
  %s3 = inlined_call_operand.vmem [shape: f32[1,128], index: 3, kind: input, shape index: {}]
  %s4 = inlined_call_operand.vmem [shape: bf16[8,128], index: 4, kind: output, shape index: {}]
  %s5 = sld [smem:[#allocation0]]
  $region30: #{critics1d_forward.4} parent=0
    _
  %s7 = ssub.s32 1, %s5
  %s8 = scalar_select 0, %s7, %s5
  $region1: #{critics1d_forward.4} parent=0
    #allocation2 [shape = 'u8[131072]{0}', space=vmem, size = 0x20000, scoped, tag = 'input window, operand 1, single buffered']
    #allocation3 [shape = 's32[1]{0}', space=sflag, size = 0x4, scoped, tag = 'scoped memory for critics1d_forward.4']
    %9 = vsyncpa [#allocation3], 0
    // Predicated region
    $region2: #{critics1d_forward.4} parent=1 // pred_check
      _
    $region3: #{critics1d_forward.4} parent=1 // pred_check_branch
      %11 = sbr.rel (0) target = $region5
    $region4: #{critics1d_forward.4} parent=1 // pred_region
      _
    $region5: #{critics1d_forward.4} parent=1 // pred_fallthru
      _
    // Predicated region
    $region6: #{critics1d_forward.4} parent=1 // pred_check
      _
    $region7: #{critics1d_forward.4} parent=1 // pred_check_branch
      %13 = sbr.rel (0) target = $region9
    $region8: #{critics1d_forward.4} parent=1 // pred_region
      %15 = vsyncadd [#allocation3], 0
      %s16 = sshll.u32 %s1, 4
      %s17 = int_to_ptr.hbm [resolvable:$true] %s16
      %s18 = sshll.u32 [#allocation2], 4
      %s19 = int_to_ptr.vmem [resolvable:$true] %s18
      %24 = dma.hbm_to_vmem [thread:$0]  %s17, 4096, %s19, [#allocation3], 64, 64, 4
    $region9: #{critics1d_forward.4} parent=1 // pred_fallthru
      _
    // Predicated region
    $region10: #{critics1d_forward.4} parent=1 // pred_check
      _
    $region11: #{critics1d_forward.4} parent=1 // pred_check_branch
      %26 = sbr.rel (0) target = $region13
    $region12: #{critics1d_forward.4} parent=1 // pred_region
      _
    $region13: #{critics1d_forward.4} parent=1 // pred_fallthru
      _
    // Predicated region
    $region14: #{critics1d_forward.4} parent=1 // pred_check
      _
    $region15: #{critics1d_forward.4} parent=1 // pred_check_branch
      %28 = sbr.rel (0) target = $region17
    $region16: #{critics1d_forward.4} parent=1 // pred_region
      _
    $region17: #{critics1d_forward.4} parent=1 // pred_fallthru
      _
    // Predicated region
    $region18: #{critics1d_forward.4} parent=1 // pred_check
      _
    $region19: #{critics1d_forward.4} parent=1 // pred_check_branch
      %30 = sbr.rel (0) target = $region21
    $region20: #{critics1d_forward.4} parent=1 // pred_region
      %32 = dma.done [#allocation3], 4096
    $region21: #{critics1d_forward.4} parent=1 // pred_fallthru
      _
    %v33 = vld [vmem:[%s0] sm:$0xff]
    %v34 = vld [vmem:[%s0 + $0x8] sm:$0xff]
    %v35 = vld [vmem:[#allocation2] sm:$0xf]
    %v36 = vld [vmem:[#allocation2 + $0x4] sm:$0xf]
    %v37 = vld [vmem:[#allocation2 + $0x8] sm:$0xf]
    %v38 = vld [vmem:[#allocation2 + $0xc] sm:$0xf]
    %v39 = vld [vmem:[#allocation2 + $0x10] sm:$0xf]
    %v40 = vld [vmem:[#allocation2 + $0x14] sm:$0xf]
    %v41 = vld [vmem:[#allocation2 + $0x18] sm:$0xf]
    %v42 = vld [vmem:[#allocation2 + $0x1c] sm:$0xf]
    %v43 = vld [vmem:[#allocation2 + $0x20] sm:$0xf]
    %v44 = vld [vmem:[#allocation2 + $0x24] sm:$0xf]
    %v45 = vld [vmem:[#allocation2 + $0x28] sm:$0xf]
    %v46 = vld [vmem:[#allocation2 + $0x2c] sm:$0xf]
    %v47 = vld [vmem:[#allocation2 + $0x30] sm:$0xf]
    %v48 = vld [vmem:[#allocation2 + $0x34] sm:$0xf]
    %v49 = vld [vmem:[#allocation2 + $0x38] sm:$0xf]
    %v50 = vld [vmem:[#allocation2 + $0x3c] sm:$0xf]
    %v51 = vld [vmem:[#allocation2 + $0x40] sm:$0xf]
    %v52 = vld [vmem:[#allocation2 + $0x44] sm:$0xf]
    %v53 = vld [vmem:[#allocation2 + $0x48] sm:$0xf]
    %v54 = vld [vmem:[#allocation2 + $0x4c] sm:$0xf]
    %v55 = vld [vmem:[#allocation2 + $0x50] sm:$0xf]
    %v56 = vld [vmem:[#allocation2 + $0x54] sm:$0xf]
    %v57 = vld [vmem:[#allocation2 + $0x58] sm:$0xf]
    %v58 = vld [vmem:[#allocation2 + $0x5c] sm:$0xf]
    %v59 = vld [vmem:[#allocation2 + $0x60] sm:$0xf]
    %v60 = vld [vmem:[#allocation2 + $0x64] sm:$0xf]
    %v61 = vld [vmem:[#allocation2 + $0x68] sm:$0xf]
    %v62 = vld [vmem:[#allocation2 + $0x6c] sm:$0xf]
    %v63 = vld [vmem:[#allocation2 + $0x70] sm:$0xf]
    %v64 = vld [vmem:[#allocation2 + $0x74] sm:$0xf]
    %v65 = vld [vmem:[#allocation2 + $0x78] sm:$0xf]
    %v66 = vld [vmem:[#allocation2 + $0x7c] sm:$0xf]
    %v67 = vld [vmem:[#allocation2 + $0x80] sm:$0xf]
    %v68 = vld [vmem:[#allocation2 + $0x84] sm:$0xf]
    %v69 = vld [vmem:[#allocation2 + $0x88] sm:$0xf]
    %v70 = vld [vmem:[#allocation2 + $0x8c] sm:$0xf]
    %v71 = vld [vmem:[#allocation2 + $0x90] sm:$0xf]
    %v72 = vld [vmem:[#allocation2 + $0x94] sm:$0xf]
    %v73 = vld [vmem:[#allocation2 + $0x98] sm:$0xf]
    %v74 = vld [vmem:[#allocation2 + $0x9c] sm:$0xf]
    %v75 = vld [vmem:[#allocation2 + $0xa0] sm:$0xf]
    %v76 = vld [vmem:[#allocation2 + $0xa4] sm:$0xf]
    %v77 = vld [vmem:[#allocation2 + $0xa8] sm:$0xf]
    %v78 = vld [vmem:[#allocation2 + $0xac] sm:$0xf]
    %v79 = vld [vmem:[#allocation2 + $0xb0] sm:$0xf]
    %v80 = vld [vmem:[#allocation2 + $0xb4] sm:$0xf]
    %v81 = vld [vmem:[#allocation2 + $0xb8] sm:$0xf]
    %v82 = vld [vmem:[#allocation2 + $0xbc] sm:$0xf]
    %v83 = vld [vmem:[#allocation2 + $0xc0] sm:$0xf]
    %v84 = vld [vmem:[#allocation2 + $0xc4] sm:$0xf]
    %v85 = vld [vmem:[#allocation2 + $0xc8] sm:$0xf]
    %v86 = vld [vmem:[#allocation2 + $0xcc] sm:$0xf]
    %v87 = vld [vmem:[#allocation2 + $0xd0] sm:$0xf]
    %v88 = vld [vmem:[#allocation2 + $0xd4] sm:$0xf]
    %v89 = vld [vmem:[#allocation2 + $0xd8] sm:$0xf]
    %v90 = vld [vmem:[#allocation2 + $0xdc] sm:$0xf]
    %v91 = vld [vmem:[#allocation2 + $0xe0] sm:$0xf]
    %v92 = vld [vmem:[#allocation2 + $0xe4] sm:$0xf]
    %v93 = vld [vmem:[#allocation2 + $0xe8] sm:$0xf]
    %v94 = vld [vmem:[#allocation2 + $0xec] sm:$0xf]
    %v95 = vld [vmem:[#allocation2 + $0xf0] sm:$0xf]
    %v96 = vld [vmem:[#allocation2 + $0xf4] sm:$0xf]
    %v97 = vld [vmem:[#allocation2 + $0xf8] sm:$0xf]
    %v98 = vld [vmem:[#allocation2 + $0xfc] sm:$0xf]
    %v101 = vunpack.c.l.b16 %v33
    %v102 = vunpack.c.h.b16 %v33
    %v103 = vunpack.c.l.b16 %v34
    %v104 = vunpack.c.h.b16 %v34
    %v105 = vpack.c.b16 %v101, %v101
    %v106 = vpack.c.b16 %v102, %v102
    %v107 = vpack.c.b16 %v103, %v103
    %v108 = vpack.c.b16 %v104, %v104
    %v177 = vunpack.c.l.b16 %v35
    %v178 = vunpack.c.l.b16 %v36
    %v179 = vunpack.c.l.b16 %v37
    %v180 = vunpack.c.l.b16 %v38
    %v181 = vunpack.c.l.b16 %v39
    %v182 = vunpack.c.l.b16 %v40
    %v183 = vunpack.c.l.b16 %v41
    %v184 = vunpack.c.l.b16 %v42
    %v185 = vunpack.c.l.b16 %v43
    %v186 = vunpack.c.l.b16 %v44
    %v187 = vunpack.c.l.b16 %v45
    %v188 = vunpack.c.l.b16 %v46
    %v189 = vunpack.c.l.b16 %v47
    %v190 = vunpack.c.l.b16 %v48
    %v191 = vunpack.c.l.b16 %v49
    %v192 = vunpack.c.l.b16 %v50
    %v193 = vunpack.c.l.b16 %v51
    %v194 = vunpack.c.l.b16 %v52
    %v195 = vunpack.c.l.b16 %v53
    %v196 = vunpack.c.l.b16 %v54
    %v197 = vunpack.c.l.b16 %v55
    %v198 = vunpack.c.l.b16 %v56
    %v199 = vunpack.c.l.b16 %v57
    %v200 = vunpack.c.l.b16 %v58
    %v201 = vunpack.c.l.b16 %v59
    %v202 = vunpack.c.l.b16 %v60
    %v203 = vunpack.c.l.b16 %v61
    %v204 = vunpack.c.l.b16 %v62
    %v205 = vunpack.c.l.b16 %v63
    %v206 = vunpack.c.l.b16 %v64
    %v207 = vunpack.c.l.b16 %v65
    %v208 = vunpack.c.l.b16 %v66
    %v209 = vunpack.c.l.b16 %v67
    %v210 = vunpack.c.l.b16 %v68
    %v211 = vunpack.c.l.b16 %v69
    %v212 = vunpack.c.l.b16 %v70
    %v213 = vunpack.c.l.b16 %v71
    %v214 = vunpack.c.l.b16 %v72
    %v215 = vunpack.c.l.b16 %v73
    %v216 = vunpack.c.l.b16 %v74
    %v217 = vunpack.c.l.b16 %v75
    %v218 = vunpack.c.l.b16 %v76
    %v219 = vunpack.c.l.b16 %v77
    %v220 = vunpack.c.l.b16 %v78
    %v221 = vunpack.c.l.b16 %v79
    %v222 = vunpack.c.l.b16 %v80
    %v223 = vunpack.c.l.b16 %v81
    %v224 = vunpack.c.l.b16 %v82
    %v225 = vunpack.c.l.b16 %v83
    %v226 = vunpack.c.l.b16 %v84
    %v227 = vunpack.c.l.b16 %v85
    %v228 = vunpack.c.l.b16 %v86
    %v229 = vunpack.c.l.b16 %v87
    %v230 = vunpack.c.l.b16 %v88
    %v231 = vunpack.c.l.b16 %v89
    %v232 = vunpack.c.l.b16 %v90
    %v233 = vunpack.c.l.b16 %v91
    %v234 = vunpack.c.l.b16 %v92
    %v235 = vunpack.c.l.b16 %v93
    %v236 = vunpack.c.l.b16 %v94
    %v237 = vunpack.c.l.b16 %v95
    %v238 = vunpack.c.l.b16 %v96
    %v239 = vunpack.c.l.b16 %v97
    %v240 = vunpack.c.l.b16 %v98
    %v241 = vpack.c.b16 %v178, %v177
    %v242 = vpack.c.b16 %v180, %v179
    %v243 = vpack.c.b16 %v182, %v181
    %v244 = vpack.c.b16 %v184, %v183
    %v245 = vpack.c.b16 %v186, %v185
    %v246 = vpack.c.b16 %v188, %v187
    %v247 = vpack.c.b16 %v190, %v189
    %v248 = vpack.c.b16 %v192, %v191
    %v249 = vpack.c.b16 %v194, %v193
    %v250 = vpack.c.b16 %v196, %v195
    %v251 = vpack.c.b16 %v198, %v197
    %v252 = vpack.c.b16 %v200, %v199
    %v253 = vpack.c.b16 %v202, %v201
    %v254 = vpack.c.b16 %v204, %v203
    %v255 = vpack.c.b16 %v206, %v205
    %v256 = vpack.c.b16 %v208, %v207
    %v257 = vpack.c.b16 %v210, %v209
    %v258 = vpack.c.b16 %v212, %v211
    %v259 = vpack.c.b16 %v214, %v213
    %v260 = vpack.c.b16 %v216, %v215
    %v261 = vpack.c.b16 %v218, %v217
    %v262 = vpack.c.b16 %v220, %v219
    %v263 = vpack.c.b16 %v222, %v221
    %v264 = vpack.c.b16 %v224, %v223
    %v265 = vpack.c.b16 %v226, %v225
    %v266 = vpack.c.b16 %v228, %v227
    %v267 = vpack.c.b16 %v230, %v229
    %v268 = vpack.c.b16 %v232, %v231
    %v269 = vpack.c.b16 %v234, %v233
    %v270 = vpack.c.b16 %v236, %v235
    %v271 = vpack.c.b16 %v238, %v237
    %v272 = vpack.c.b16 %v240, %v239
    %305 = vmatpush.bf16.msra.mxu0 %v248
    %306 = vmatpush.bf16.msra.mxu0 %v247
    %307 = vmatpush.bf16.msra.mxu0 %v246
    %308 = vmatpush.bf16.msra.mxu0 %v245
    %309 = vmatpush.bf16.msra.mxu0 %v244
    %310 = vmatpush.bf16.msra.mxu0 %v243
    %311 = vmatpush.bf16.msra.mxu0 %v242
    %312 = vmatpush.bf16.msra.mxu0 %v241
    %313 = vmatmul.bf16.gmra.mxu0 %v105
    %v314 = vpop.f32.mrf.mxu0
    %v315 = vadd.f32 0.0, %v314
    %v316 = vpop.f32.mrf.mxu0
    %317 = vdwg.mxu0
    %318 = vmatpush.bf16.msra.mxu0 %v256
    %319 = vmatpush.bf16.msra.mxu0 %v255
    %320 = vmatpush.bf16.msra.mxu0 %v254
    %321 = vmatpush.bf16.msra.mxu0 %v253
    %322 = vmatpush.bf16.msra.mxu0 %v252
    %323 = vmatpush.bf16.msra.mxu0 %v251
    %324 = vmatpush.bf16.msra.mxu0 %v250
    %325 = vmatpush.bf16.msra.mxu0 %v249
    %326 = vmatmul.bf16.gmra.mxu0 %v106
    %v327 = vpop.f32.mrf.mxu0
    %v328 = vadd.f32 %v315, %v327
    %v329 = vpop.f32.mrf.mxu0
    %330 = vdwg.mxu0
    %331 = vmatpush.bf16.msra.mxu0 %v264
    %332 = vmatpush.bf16.msra.mxu0 %v263
    %333 = vmatpush.bf16.msra.mxu0 %v262
    %334 = vmatpush.bf16.msra.mxu0 %v261
    %335 = vmatpush.bf16.msra.mxu0 %v260
    %336 = vmatpush.bf16.msra.mxu0 %v259
    %337 = vmatpush.bf16.msra.mxu0 %v258
    %338 = vmatpush.bf16.msra.mxu0 %v257
    %339 = vmatmul.bf16.gmra.mxu0 %v107
    %v340 = vpop.f32.mrf.mxu0
    %v341 = vadd.f32 %v328, %v340
    %v342 = vpop.f32.mrf.mxu0
    %343 = vdwg.mxu0
    %344 = vmatpush.bf16.msra.mxu0 %v272
    %345 = vmatpush.bf16.msra.mxu0 %v271
    %346 = vmatpush.bf16.msra.mxu0 %v270
    %347 = vmatpush.bf16.msra.mxu0 %v269
    %348 = vmatpush.bf16.msra.mxu0 %v268
    %349 = vmatpush.bf16.msra.mxu0 %v267
    %350 = vmatpush.bf16.msra.mxu0 %v266
    %351 = vmatpush.bf16.msra.mxu0 %v265
    %352 = vmatmul.bf16.gmra.mxu0 %v108
    %v353 = vpop.f32.mrf.mxu0
    %v354 = vadd.f32 %v341, %v353
    %v355 = vpop.f32.mrf.mxu0
    %356 = vdwg.mxu0
    %v357 = vld [vmem:[%s2] sm:$0x1]
    %v359 = vperm.slane %v357, 0
    %v361 = vmul.f32 %v354, %v359
    %v362 = vld [vmem:[%s3] sm:$0x1]
    %v364 = vperm.slane %v362, 0
    %v366 = vadd.f32 %v361, %v364
    %vm367 = vcmp.gt.f32.partialorder %v366, 0.0
    %v368 = vmul.f32 %v366, 0.2
    %v369 = vsel %vm367, %v366, %v368
    %v370 = vpack.c.bf16 %v369, %v369
    %371 = vst [vmem:[%s4] sm:$0xf] %v370
    // Predicated region
    $region22: #{critics1d_forward.4} parent=1 // pred_check
      _
    $region23: #{critics1d_forward.4} parent=1 // pred_check_branch
      %373 = sbr.rel (0) target = $region25
    $region24: #{critics1d_forward.4} parent=1 // pred_region
      _
    $region25: #{critics1d_forward.4} parent=1 // pred_fallthru
      _
    // Predicated region
    $region26: #{critics1d_forward.4} parent=1 // pred_check
      _
    $region27: #{critics1d_forward.4} parent=1 // pred_check_branch
      %375 = sbr.rel (0) target = $region29
    $region28: #{critics1d_forward.4} parent=1 // pred_region
      _
    $region29: #{critics1d_forward.4} parent=1 // pred_fallthru
      _
    %376 = vsyncpa [#allocation3], 1

// kernel: critics1d_forward.3
$region0: #{critics1d_forward.3}
  #allocation0 [shape = 'u32[]', space=smem, size = 0x4, offset = 0x4, fixed_abs, tag = 'smem constant byte address 0x4 - core index']
  #allocation1 [shape = 'u32[72,128]{1,0:T(1,128)}', space=vmem, size = 0x9000, scoped, tag = 'internal scratch']
  %s0 = inlined_call_operand.vmem [shape: bf16[16,512], index: 0, kind: input, shape index: {}]
  %s1 = inlined_call_operand.vmem [shape: bf16[512,128], index: 1, kind: input, shape index: {}]
  %s2 = inlined_call_operand.vmem [shape: f32[1,128], index: 2, kind: input, shape index: {}]
  %s3 = inlined_call_operand.vmem [shape: f32[1,128], index: 3, kind: input, shape index: {}]
  %s4 = inlined_call_operand.vmem [shape: bf16[16,128], index: 4, kind: output, shape index: {}]
  %s5 = sld [smem:[#allocation0]]
  $region49: #{critics1d_forward.3} parent=0
    _
  %s7 = ssub.s32 1, %s5
  %s8 = scalar_select 0, %s7, %s5
  loop: start=0, step=1, limit=4
  $region2: #{critics1d_forward.3} parent=0 // loop_pre_header
    _
  $region3: #{critics1d_forward.3} parent=0 // loop_header
    %s10 = sphi 0, %s14
    %p11 = scmp.ge.s32.totalorder %s10, 4
    %s20 = sphi 0, %s22
    %s23 = sphi 0, %s20
    %s24 = sphi 0, %s23
    %s40 = sphi 0, %s24
    %s44 = sphi 0, %s44
    %s46 = sphi 0, %s44
    %s47 = sphi 0, %s46
    %s61 = sphi 0, %s47
    %s65 = sphi 0, %s65
    %s67 = sphi 0, %s65
    %s68 = sphi 0, %s67
    %s82 = sphi 0, %s68
    %s86 = sphi 0, %s86
    %s88 = sphi 0, %s86
    %s89 = sphi 0, %s88
    %s103 = sphi 0, %s89
    %s109 = sphi 0, %s111
    %s112 = sphi 0, %s109
    %s113 = sphi 0, %s112
    %s129 = sphi 0, %s113
  $region4: #{critics1d_forward.3} parent=0 // loop_header_branch
    %13 = sbr.rel (%p11) target = $region8
  $region5: #{critics1d_forward.3} parent=0 // loop_body
    %s15 = ssub.s32 %s10, 1
    %s16 = ssub.s32 %s10, 2
    %s17 = sadd.s32 %s10, 1
    %s18 = ssub.s32 %s10, %s17
    %p19 = scmp.eq.s32.totalorder %s18, 0
    %s21 = sadd.s32 %s20, 1
    %s22 = scalar_select %p19, %s20, %s21
    %p25 = pneg %p19
    %p26 = scmp.eq.s32.totalorder %s10, 1
    %p27 = por %p25, %p26
    %p28 = scmp.ne.s32.totalorder %s20, %s23
    %p29 = scmp.eq.s32.totalorder %s10, 0
    %p30 = por %p28, %p29
    %p31 = scmp.ne.s32.totalorder %s20, %s23
    %p32 = scmp.eq.s32.totalorder %s15, 1
    %p33 = por %p31, %p32
    %p34 = scmp.ne.s32.totalorder %s23, %s24
    %p35 = scmp.eq.s32.totalorder %s15, 0
    %p36 = por %p34, %p35
    %p37 = scmp.ne.s32.totalorder %s23, %s24
    %p38 = scmp.eq.s32.totalorder %s16, 1
    %p39 = por %p37, %p38
    %p41 = scmp.ne.s32.totalorder %s24, %s40
    %p42 = scmp.eq.s32.totalorder %s16, 0
    %p43 = por %p41, %p42
    %s45 = sadd.s32 %s44, 1
    %p48 = scmp.eq.s32.totalorder %s10, 1
    %p49 = scmp.ne.s32.totalorder %s44, %s46
    %p50 = scmp.eq.s32.totalorder %s10, 0
    %p51 = por %p49, %p50
    %p52 = scmp.ne.s32.totalorder %s44, %s46
    %p53 = scmp.eq.s32.totalorder %s15, 1
    %p54 = por %p52, %p53
    %p55 = scmp.ne.s32.totalorder %s46, %s47
    %p56 = scmp.eq.s32.totalorder %s15, 0
    %p57 = por %p55, %p56
    %p58 = scmp.ne.s32.totalorder %s46, %s47
    %p59 = scmp.eq.s32.totalorder %s16, 1
    %p60 = por %p58, %p59
    %p62 = scmp.ne.s32.totalorder %s47, %s61
    %p63 = scmp.eq.s32.totalorder %s16, 0
    %p64 = por %p62, %p63
    %s66 = sadd.s32 %s65, 1
    %p69 = scmp.eq.s32.totalorder %s10, 1
    %p70 = scmp.ne.s32.totalorder %s65, %s67
    %p71 = scmp.eq.s32.totalorder %s10, 0
    %p72 = por %p70, %p71
    %p73 = scmp.ne.s32.totalorder %s65, %s67
    %p74 = scmp.eq.s32.totalorder %s15, 1
    %p75 = por %p73, %p74
    %p76 = scmp.ne.s32.totalorder %s67, %s68
    %p77 = scmp.eq.s32.totalorder %s15, 0
    %p78 = por %p76, %p77
    %p79 = scmp.ne.s32.totalorder %s67, %s68
    %p80 = scmp.eq.s32.totalorder %s16, 1
    %p81 = por %p79, %p80
    %p83 = scmp.ne.s32.totalorder %s68, %s82
    %p84 = scmp.eq.s32.totalorder %s16, 0
    %p85 = por %p83, %p84
    %s87 = sadd.s32 %s86, 1
    %p90 = scmp.eq.s32.totalorder %s10, 1
    %p91 = scmp.ne.s32.totalorder %s86, %s88
    %p92 = scmp.eq.s32.totalorder %s10, 0
    %p93 = por %p91, %p92
    %p94 = scmp.ne.s32.totalorder %s86, %s88
    %p95 = scmp.eq.s32.totalorder %s15, 1
    %p96 = por %p94, %p95
    %p97 = scmp.ne.s32.totalorder %s88, %s89
    %p98 = scmp.eq.s32.totalorder %s15, 0
    %p99 = por %p97, %p98
    %p100 = scmp.ne.s32.totalorder %s88, %s89
    %p101 = scmp.eq.s32.totalorder %s16, 1
    %p102 = por %p100, %p101
    %p104 = scmp.ne.s32.totalorder %s89, %s103
    %p105 = scmp.eq.s32.totalorder %s16, 0
    %p106 = por %p104, %p105
    %s107 = ssub.s32 %s10, %s17
    %p108 = scmp.eq.s32.totalorder %s107, 0
    %s110 = sadd.s32 %s109, 1
    %s111 = scalar_select %p108, %s109, %s110
    %p114 = pneg %p108
    %p115 = scmp.eq.s32.totalorder %s10, 1
    %p116 = por %p114, %p115
    %p117 = scmp.ne.s32.totalorder %s109, %s112
    %p118 = scmp.eq.s32.totalorder %s10, 0
    %p119 = por %p117, %p118
    %p120 = scmp.ne.s32.totalorder %s109, %s112
    %p121 = scmp.eq.s32.totalorder %s15, 1
    %p122 = por %p120, %p121
    %p123 = scmp.ne.s32.totalorder %s112, %s113
    %p124 = scmp.eq.s32.totalorder %s15, 0
    %p125 = por %p123, %p124
    %p126 = scmp.ne.s32.totalorder %s112, %s113
    %p127 = scmp.eq.s32.totalorder %s16, 1
    %p128 = por %p126, %p127
    %p130 = scmp.ne.s32.totalorder %s113, %s129
    %p131 = scmp.eq.s32.totalorder %s16, 0
    %p132 = por %p130, %p131
    %p133 = scmp.le.s32.totalorder 1, %s10
    %p134 = scmp.lt.s32.totalorder %s10, 3
    %p135 = pnand %p133, %p134
    %p136 = pneg %p135
    // Predicated region
    $region9: #{critics1d_forward.3} parent=5 // pred_check
      _
    $region10: #{critics1d_forward.3} parent=5 // pred_check_branch
      %138 = sbr.rel (%p135) target = $region12
    $region11: #{critics1d_forward.3} parent=5 // pred_region
      %s139 = ssub.s32 %s10, 1
      // Predicated region
      $region13: #{critics1d_forward.3} parent=11 // pred_check
        %p140 = pneg %p57
      $region14: #{critics1d_forward.3} parent=11 // pred_check_branch
        %142 = sbr.rel (%p140) target = $region16
      $region15: #{critics1d_forward.3} parent=11 // pred_region
        _
      $region16: #{critics1d_forward.3} parent=11 // pred_fallthru
        _
      // Predicated region
      $region17: #{critics1d_forward.3} parent=11 // pred_check
        %p143 = pneg %p78
      $region18: #{critics1d_forward.3} parent=11 // pred_check_branch
        %145 = sbr.rel (%p143) target = $region20
      $region19: #{critics1d_forward.3} parent=11 // pred_region
        _
      $region20: #{critics1d_forward.3} parent=11 // pred_fallthru
        _
      // Predicated region
      $region21: #{critics1d_forward.3} parent=11 // pred_check
        %p146 = pneg %p99
      $region22: #{critics1d_forward.3} parent=11 // pred_check_branch
        %148 = sbr.rel (%p146) target = $region24
      $region23: #{critics1d_forward.3} parent=11 // pred_region
        _
      $region24: #{critics1d_forward.3} parent=11 // pred_fallthru
        _
    $region12: #{critics1d_forward.3} parent=5 // pred_fallthru
      _
    %p149 = scmp.lt.s32.totalorder %s10, 2
    // Predicated region
    $region25: #{critics1d_forward.3} parent=5 // pred_check
      %p150 = pneg %p149
    $region26: #{critics1d_forward.3} parent=5 // pred_check_branch
      %152 = sbr.rel (%p150) target = $region28
    $region27: #{critics1d_forward.3} parent=5 // pred_region
      // Predicated region
      $region29: #{critics1d_forward.3} parent=27 // pred_check
        %p153 = pneg %p30
      $region30: #{critics1d_forward.3} parent=27 // pred_check_branch
        %155 = sbr.rel (%p153) target = $region32
      $region31: #{critics1d_forward.3} parent=27 // pred_region
        %p156 = scmp.lt.s32.totalorder %s10, 1
        %s157 = scalar_select %p156, %s10, 1
        %s158 = smul.addr %s157, 4
        %s159 = smul.addr %s158, 4
        %s160 = scalar_lea.vmem %s0, %s159
      $region32: #{critics1d_forward.3} parent=27 // pred_fallthru
        _
    $region28: #{critics1d_forward.3} parent=5 // pred_fallthru
      _
    %p161 = scmp.le.s32.totalorder 1, %s10
    %p162 = scmp.lt.s32.totalorder %s10, 3
    %p163 = pnand %p161, %p162
    %p164 = pneg %p163
    // Predicated region
    $region33: #{critics1d_forward.3} parent=5 // pred_check
      _
    $region34: #{critics1d_forward.3} parent=5 // pred_check_branch
      %166 = sbr.rel (%p163) target = $region36
    $region35: #{critics1d_forward.3} parent=5 // pred_region
      %s167 = ssub.s32 %s10, 1
      %p168 = scmp.lt.s32.totalorder %s15, 1
      %s169 = scalar_select %p168, %s15, 1
      %s170 = smul.addr %s169, 4
      %s171 = smul.addr %s170, 4
      %s172 = scalar_lea.vmem %s0, %s171
      %p173 = pneg %p36
      %p174 = pneg %p33
      %p175 = pneg %p57
      %p176 = pneg %p54
      %p177 = pneg %p78
      %p178 = pneg %p75
      %p179 = pneg %p99
      %p180 = pneg %p96
      %p181 = pneg %p125
      %p182 = pneg %p122
      %p183 = scmp.lt.s32.totalorder %s15, 1
      %s184 = scalar_select %p183, %s15, 1
      %s185 = smul.addr %s184, 4
      %s186 = scalar_lea.vmem %s4, %s185
      %p187 = scmp.lt.s32.totalorder %s15, 1
      %s188 = scalar_select %p187, %s15, 1
      %s189 = smul.addr %s188, 4
      %s190 = smul.addr %s189, 4
      %s191 = scalar_lea.vmem %s0, %s190
      %p192 = scmp.lt.s32.totalorder %s15, 1
      %s193 = scalar_select %p192, %s15, 1
      %s194 = smul.addr %s193, 4
      %s195 = scalar_lea.vmem %s4, %s194
      %v196 = vld [vmem:[%s191] sm:$0xff]
      %v197 = vld [vmem:[%s191 + $0x8] sm:$0xff]
      %v198 = vld [vmem:[%s1] sm:$0xf]
      %v199 = vld [vmem:[%s1 + $0x4] sm:$0xf]
      %v200 = vld [vmem:[%s1 + $0x8] sm:$0xf]
      %v201 = vld [vmem:[%s1 + $0xc] sm:$0xf]
      %v202 = vld [vmem:[%s1 + $0x10] sm:$0xf]
      %v203 = vld [vmem:[%s1 + $0x14] sm:$0xf]
      %v204 = vld [vmem:[%s1 + $0x18] sm:$0xf]
      %v205 = vld [vmem:[%s1 + $0x1c] sm:$0xf]
      %v206 = vld [vmem:[%s1 + $0x20] sm:$0xf]
      %v207 = vld [vmem:[%s1 + $0x24] sm:$0xf]
      %v208 = vld [vmem:[%s1 + $0x28] sm:$0xf]
      %v209 = vld [vmem:[%s1 + $0x2c] sm:$0xf]
      %v210 = vld [vmem:[%s1 + $0x30] sm:$0xf]
      %v211 = vld [vmem:[%s1 + $0x34] sm:$0xf]
      %v212 = vld [vmem:[%s1 + $0x38] sm:$0xf]
      %v213 = vld [vmem:[%s1 + $0x3c] sm:$0xf]
      %v214 = vld [vmem:[%s1 + $0x40] sm:$0xf]
      %v215 = vld [vmem:[%s1 + $0x44] sm:$0xf]
      %v216 = vld [vmem:[%s1 + $0x48] sm:$0xf]
      %v217 = vld [vmem:[%s1 + $0x4c] sm:$0xf]
      %v218 = vld [vmem:[%s1 + $0x50] sm:$0xf]
      %v219 = vld [vmem:[%s1 + $0x54] sm:$0xf]
      %v220 = vld [vmem:[%s1 + $0x58] sm:$0xf]
      %v221 = vld [vmem:[%s1 + $0x5c] sm:$0xf]
      %v222 = vld [vmem:[%s1 + $0x60] sm:$0xf]
      %v223 = vld [vmem:[%s1 + $0x64] sm:$0xf]
      %v224 = vld [vmem:[%s1 + $0x68] sm:$0xf]
      %v225 = vld [vmem:[%s1 + $0x6c] sm:$0xf]
      %v226 = vld [vmem:[%s1 + $0x70] sm:$0xf]
      %v227 = vld [vmem:[%s1 + $0x74] sm:$0xf]
      %v228 = vld [vmem:[%s1 + $0x78] sm:$0xf]
      %v229 = vld [vmem:[%s1 + $0x7c] sm:$0xf]
      %v230 = vld [vmem:[%s1 + $0x80] sm:$0xf]
      %v231 = vld [vmem:[%s1 + $0x84] sm:$0xf]
      %v232 = vld [vmem:[%s1 + $0x88] sm:$0xf]
      %v233 = vld [vmem:[%s1 + $0x8c] sm:$0xf]
      %v234 = vld [vmem:[%s1 + $0x90] sm:$0xf]
      %v235 = vld [vmem:[%s1 + $0x94] sm:$0xf]
      %v236 = vld [vmem:[%s1 + $0x98] sm:$0xf]
      %v237 = vld [vmem:[%s1 + $0x9c] sm:$0xf]
      %v238 = vld [vmem:[%s1 + $0xa0] sm:$0xf]
      %v239 = vld [vmem:[%s1 + $0xa4] sm:$0xf]
      %v240 = vld [vmem:[%s1 + $0xa8] sm:$0xf]
      %v241 = vld [vmem:[%s1 + $0xac] sm:$0xf]
      %v242 = vld [vmem:[%s1 + $0xb0] sm:$0xf]
      %v243 = vld [vmem:[%s1 + $0xb4] sm:$0xf]
      %v244 = vld [vmem:[%s1 + $0xb8] sm:$0xf]
      %v245 = vld [vmem:[%s1 + $0xbc] sm:$0xf]
      %v246 = vld [vmem:[%s1 + $0xc0] sm:$0xf]
      %v247 = vld [vmem:[%s1 + $0xc4] sm:$0xf]
      %v248 = vld [vmem:[%s1 + $0xc8] sm:$0xf]
      %v249 = vld [vmem:[%s1 + $0xcc] sm:$0xf]
      %v250 = vld [vmem:[%s1 + $0xd0] sm:$0xf]
      %v251 = vld [vmem:[%s1 + $0xd4] sm:$0xf]
      %v252 = vld [vmem:[%s1 + $0xd8] sm:$0xf]
      %v253 = vld [vmem:[%s1 + $0xdc] sm:$0xf]
      %v254 = vld [vmem:[%s1 + $0xe0] sm:$0xf]
      %v255 = vld [vmem:[%s1 + $0xe4] sm:$0xf]
      %v256 = vld [vmem:[%s1 + $0xe8] sm:$0xf]
      %v257 = vld [vmem:[%s1 + $0xec] sm:$0xf]
      %v258 = vld [vmem:[%s1 + $0xf0] sm:$0xf]
      %v259 = vld [vmem:[%s1 + $0xf4] sm:$0xf]
      %v260 = vld [vmem:[%s1 + $0xf8] sm:$0xf]
      %v261 = vld [vmem:[%s1 + $0xfc] sm:$0xf]
      %v264 = vunpack.c.l.b16 %v196
      %v265 = vunpack.c.h.b16 %v196
      %v266 = vunpack.c.l.b16 %v197
      %v267 = vunpack.c.h.b16 %v197
      %v268 = vpack.c.b16 %v264, %v264
      %v269 = vpack.c.b16 %v265, %v265
      %v270 = vpack.c.b16 %v266, %v266
      %v271 = vpack.c.b16 %v267, %v267
      %v340 = vunpack.c.l.b16 %v198
      %v341 = vunpack.c.l.b16 %v199
      %v342 = vunpack.c.l.b16 %v200
      %v343 = vunpack.c.l.b16 %v201
      %v344 = vunpack.c.l.b16 %v202
      %v345 = vunpack.c.l.b16 %v203
      %v346 = vunpack.c.l.b16 %v204
      %v347 = vunpack.c.l.b16 %v205
      %v348 = vunpack.c.l.b16 %v206
      %v349 = vunpack.c.l.b16 %v207
      %v350 = vunpack.c.l.b16 %v208
      %v351 = vunpack.c.l.b16 %v209
      %v352 = vunpack.c.l.b16 %v210
      %v353 = vunpack.c.l.b16 %v211
      %v354 = vunpack.c.l.b16 %v212
      %v355 = vunpack.c.l.b16 %v213
      %v356 = vunpack.c.l.b16 %v214
      %v357 = vunpack.c.l.b16 %v215
      %v358 = vunpack.c.l.b16 %v216
      %v359 = vunpack.c.l.b16 %v217
      %v360 = vunpack.c.l.b16 %v218
      %v361 = vunpack.c.l.b16 %v219
      %v362 = vunpack.c.l.b16 %v220
      %v363 = vunpack.c.l.b16 %v221
      %v364 = vunpack.c.l.b16 %v222
      %v365 = vunpack.c.l.b16 %v223
      %v366 = vunpack.c.l.b16 %v224
      %v367 = vunpack.c.l.b16 %v225
      %v368 = vunpack.c.l.b16 %v226
      %v369 = vunpack.c.l.b16 %v227
      %v370 = vunpack.c.l.b16 %v228
      %v371 = vunpack.c.l.b16 %v229
      %v372 = vunpack.c.l.b16 %v230
      %v373 = vunpack.c.l.b16 %v231
      %v374 = vunpack.c.l.b16 %v232
      %v375 = vunpack.c.l.b16 %v233
      %v376 = vunpack.c.l.b16 %v234
      %v377 = vunpack.c.l.b16 %v235
      %v378 = vunpack.c.l.b16 %v236
      %v379 = vunpack.c.l.b16 %v237
      %v380 = vunpack.c.l.b16 %v238
      %v381 = vunpack.c.l.b16 %v239
      %v382 = vunpack.c.l.b16 %v240
      %v383 = vunpack.c.l.b16 %v241
      %v384 = vunpack.c.l.b16 %v242
      %v385 = vunpack.c.l.b16 %v243
      %v386 = vunpack.c.l.b16 %v244
      %v387 = vunpack.c.l.b16 %v245
      %v388 = vunpack.c.l.b16 %v246
      %v389 = vunpack.c.l.b16 %v247
      %v390 = vunpack.c.l.b16 %v248
      %v391 = vunpack.c.l.b16 %v249
      %v392 = vunpack.c.l.b16 %v250
      %v393 = vunpack.c.l.b16 %v251
      %v394 = vunpack.c.l.b16 %v252
      %v395 = vunpack.c.l.b16 %v253
      %v396 = vunpack.c.l.b16 %v254
      %v397 = vunpack.c.l.b16 %v255
      %v398 = vunpack.c.l.b16 %v256
      %v399 = vunpack.c.l.b16 %v257
      %v400 = vunpack.c.l.b16 %v258
      %v401 = vunpack.c.l.b16 %v259
      %v402 = vunpack.c.l.b16 %v260
      %v403 = vunpack.c.l.b16 %v261
      %v404 = vpack.c.b16 %v341, %v340
      %v405 = vpack.c.b16 %v343, %v342
      %v406 = vpack.c.b16 %v345, %v344
      %v407 = vpack.c.b16 %v347, %v346
      %v408 = vpack.c.b16 %v349, %v348
      %v409 = vpack.c.b16 %v351, %v350
      %v410 = vpack.c.b16 %v353, %v352
      %v411 = vpack.c.b16 %v355, %v354
      %v412 = vpack.c.b16 %v357, %v356
      %v413 = vpack.c.b16 %v359, %v358
      %v414 = vpack.c.b16 %v361, %v360
      %v415 = vpack.c.b16 %v363, %v362
      %v416 = vpack.c.b16 %v365, %v364
      %v417 = vpack.c.b16 %v367, %v366
      %v418 = vpack.c.b16 %v369, %v368
      %v419 = vpack.c.b16 %v371, %v370
      %v420 = vpack.c.b16 %v373, %v372
      %v421 = vpack.c.b16 %v375, %v374
      %v422 = vpack.c.b16 %v377, %v376
      %v423 = vpack.c.b16 %v379, %v378
      %v424 = vpack.c.b16 %v381, %v380
      %v425 = vpack.c.b16 %v383, %v382
      %v426 = vpack.c.b16 %v385, %v384
      %v427 = vpack.c.b16 %v387, %v386
      %v428 = vpack.c.b16 %v389, %v388
      %v429 = vpack.c.b16 %v391, %v390
      %v430 = vpack.c.b16 %v393, %v392
      %v431 = vpack.c.b16 %v395, %v394
      %v432 = vpack.c.b16 %v397, %v396
      %v433 = vpack.c.b16 %v399, %v398
      %v434 = vpack.c.b16 %v401, %v400
      %v435 = vpack.c.b16 %v403, %v402
      %468 = vmatpush.bf16.msra.mxu0 %v411
      %469 = vmatpush.bf16.msra.mxu0 %v410
      %470 = vmatpush.bf16.msra.mxu0 %v409
      %471 = vmatpush.bf16.msra.mxu0 %v408
      %472 = vmatpush.bf16.msra.mxu0 %v407
      %473 = vmatpush.bf16.msra.mxu0 %v406
      %474 = vmatpush.bf16.msra.mxu0 %v405
      %475 = vmatpush.bf16.msra.mxu0 %v404
      %476 = vmatmul.bf16.gmra.mxu0 %v268
      %v477 = vpop.f32.mrf.mxu0
      %v478 = vadd.f32 0.0, %v477
      %v479 = vpop.f32.mrf.mxu0
      %480 = vdwg.mxu0
      %481 = vmatpush.bf16.msra.mxu0 %v419
      %482 = vmatpush.bf16.msra.mxu0 %v418
      %483 = vmatpush.bf16.msra.mxu0 %v417
      %484 = vmatpush.bf16.msra.mxu0 %v416
      %485 = vmatpush.bf16.msra.mxu0 %v415
      %486 = vmatpush.bf16.msra.mxu0 %v414
      %487 = vmatpush.bf16.msra.mxu0 %v413
      %488 = vmatpush.bf16.msra.mxu0 %v412
      %489 = vmatmul.bf16.gmra.mxu0 %v269
      %v490 = vpop.f32.mrf.mxu0
      %v491 = vadd.f32 %v478, %v490
      %v492 = vpop.f32.mrf.mxu0
      %493 = vdwg.mxu0
      %494 = vmatpush.bf16.msra.mxu0 %v427
      %495 = vmatpush.bf16.msra.mxu0 %v426
      %496 = vmatpush.bf16.msra.mxu0 %v425
      %497 = vmatpush.bf16.msra.mxu0 %v424
      %498 = vmatpush.bf16.msra.mxu0 %v423
      %499 = vmatpush.bf16.msra.mxu0 %v422
      %500 = vmatpush.bf16.msra.mxu0 %v421
      %501 = vmatpush.bf16.msra.mxu0 %v420
      %502 = vmatmul.bf16.gmra.mxu0 %v270
      %v503 = vpop.f32.mrf.mxu0
      %v504 = vadd.f32 %v491, %v503
      %v505 = vpop.f32.mrf.mxu0
      %506 = vdwg.mxu0
      %507 = vmatpush.bf16.msra.mxu0 %v435
      %508 = vmatpush.bf16.msra.mxu0 %v434
      %509 = vmatpush.bf16.msra.mxu0 %v433
      %510 = vmatpush.bf16.msra.mxu0 %v432
      %511 = vmatpush.bf16.msra.mxu0 %v431
      %512 = vmatpush.bf16.msra.mxu0 %v430
      %513 = vmatpush.bf16.msra.mxu0 %v429
      %514 = vmatpush.bf16.msra.mxu0 %v428
      %515 = vmatmul.bf16.gmra.mxu0 %v271
      %v516 = vpop.f32.mrf.mxu0
      %v517 = vadd.f32 %v504, %v516
      %v518 = vpop.f32.mrf.mxu0
      %519 = vdwg.mxu0
      %v520 = vld [vmem:[%s2] sm:$0x1]
      %v522 = vperm.slane %v520, 0
      %v524 = vmul.f32 %v517, %v522
      %v525 = vld [vmem:[%s3] sm:$0x1]
      %v527 = vperm.slane %v525, 0
      %v529 = vadd.f32 %v524, %v527
      %vm530 = vcmp.gt.f32.partialorder %v529, 0.0
      %v531 = vmul.f32 %v529, 0.2
      %v532 = vsel %vm530, %v529, %v531
      %v533 = vpack.c.bf16 %v532, %v532
      %534 = vst [vmem:[%s195] sm:$0xf] %v533
      %p535 = scmp.lt.s32.totalorder %s15, 1
      %s536 = scalar_select %p535, %s15, 1
      %s537 = smul.addr %s536, 4
      %s538 = scalar_lea.vmem %s4, %s537
      // Predicated region
      $region37: #{critics1d_forward.3} parent=35 // pred_check
        %p539 = pneg %p122
      $region38: #{critics1d_forward.3} parent=35 // pred_check_branch
        %541 = sbr.rel (%p539) target = $region40
      $region39: #{critics1d_forward.3} parent=35 // pred_region
        _
      $region40: #{critics1d_forward.3} parent=35 // pred_fallthru
        _
    $region36: #{critics1d_forward.3} parent=5 // pred_fallthru
      _
    %p542 = scmp.le.s32.totalorder 2, %s10
    // Predicated region
    $region41: #{critics1d_forward.3} parent=5 // pred_check
      %p543 = pneg %p542
    $region42: #{critics1d_forward.3} parent=5 // pred_check_branch
      %545 = sbr.rel (%p543) target = $region44
    $region43: #{critics1d_forward.3} parent=5 // pred_region
      %s546 = ssub.s32 %s10, 2
      // Predicated region
      $region45: #{critics1d_forward.3} parent=43 // pred_check
        %p547 = pneg %p128
      $region46: #{critics1d_forward.3} parent=43 // pred_check_branch
        %549 = sbr.rel (%p547) target = $region48
      $region47: #{critics1d_forward.3} parent=43 // pred_region
        %p550 = scmp.lt.s32.totalorder %s16, 1
        %s551 = scalar_select %p550, %s16, 1
        %s552 = smul.addr %s551, 4
        %s553 = scalar_lea.vmem %s4, %s552
      $region48: #{critics1d_forward.3} parent=43 // pred_fallthru
        _
    $region44: #{critics1d_forward.3} parent=5 // pred_fallthru
      _
  $region6: #{critics1d_forward.3} parent=0 // loop_footer
    %s14 = sadd.s32 1, %s10
  $region7: #{critics1d_forward.3} parent=0 // loop_footer_branch
    %9 = sbr.rel target = $region3
  $region8: #{critics1d_forward.3} parent=0 // loop_exit
    _

// kernel: critics1d_forward.5
$region0: #{critics1d_forward.5}
  #allocation0 [shape = 'u32[]', space=smem, size = 0x4, offset = 0x4, fixed_abs, tag = 'smem constant byte address 0x4 - core index']
  #allocation1 [shape = 'u32[72,128]{1,0:T(1,128)}', space=vmem, size = 0x9000, scoped, tag = 'internal scratch']
  %s0 = inlined_call_operand.vmem [shape: bf16[8,128], index: 0, kind: input, shape index: {}]
  %s1 = inlined_call_operand.vmem [shape: bf16[128,128], index: 1, kind: input, shape index: {}]
  %s2 = inlined_call_operand.vmem [shape: f32[1,128], index: 2, kind: input, shape index: {}]
  %s3 = inlined_call_operand.vmem [shape: bf16[128,128], index: 3, kind: input, shape index: {}]
  %s4 = inlined_call_operand.vmem [shape: f32[1,128], index: 4, kind: input, shape index: {}]
  %s5 = inlined_call_operand.hbm [shape: bf16[128,128], index: 5, kind: input, shape index: {}]
  %s6 = inlined_call_operand.vmem [shape: f32[1,128], index: 6, kind: input, shape index: {}]
  %s7 = inlined_call_operand.vmem [shape: f32[8,128], index: 7, kind: output, shape index: {}]
  %s8 = sld [smem:[#allocation0]]
  $region42: #{critics1d_forward.5} parent=0
    _
  %s10 = ssub.s32 1, %s8
  %s11 = scalar_select 0, %s10, %s8
  $region1: #{critics1d_forward.5} parent=0
    #allocation2 [shape = 'u8[32768]{0}', space=vmem, size = 0x8000, scoped, tag = 'input window, operand 5, single buffered']
    #allocation3 [shape = 's32[1]{0}', space=sflag, size = 0x4, scoped, tag = 'scoped memory for critics1d_forward.5']
    %12 = vsyncpa [#allocation3], 0
    // Predicated region
    $region2: #{critics1d_forward.5} parent=1 // pred_check
      _
    $region3: #{critics1d_forward.5} parent=1 // pred_check_branch
      %14 = sbr.rel (0) target = $region5
    $region4: #{critics1d_forward.5} parent=1 // pred_region
      _
    $region5: #{critics1d_forward.5} parent=1 // pred_fallthru
      _
    // Predicated region
    $region6: #{critics1d_forward.5} parent=1 // pred_check
      _
    $region7: #{critics1d_forward.5} parent=1 // pred_check_branch
      %16 = sbr.rel (0) target = $region9
    $region8: #{critics1d_forward.5} parent=1 // pred_region
      _
    $region9: #{critics1d_forward.5} parent=1 // pred_fallthru
      _
    // Predicated region
    $region10: #{critics1d_forward.5} parent=1 // pred_check
      _
    $region11: #{critics1d_forward.5} parent=1 // pred_check_branch
      %18 = sbr.rel (0) target = $region13
    $region12: #{critics1d_forward.5} parent=1 // pred_region
      _
    $region13: #{critics1d_forward.5} parent=1 // pred_fallthru
      _
    // Predicated region
    $region14: #{critics1d_forward.5} parent=1 // pred_check
      _
    $region15: #{critics1d_forward.5} parent=1 // pred_check_branch
      %20 = sbr.rel (0) target = $region17
    $region16: #{critics1d_forward.5} parent=1 // pred_region
      _
    $region17: #{critics1d_forward.5} parent=1 // pred_fallthru
      _
    // Predicated region
    $region18: #{critics1d_forward.5} parent=1 // pred_check
      _
    $region19: #{critics1d_forward.5} parent=1 // pred_check_branch
      %22 = sbr.rel (0) target = $region21
    $region20: #{critics1d_forward.5} parent=1 // pred_region
      _
    $region21: #{critics1d_forward.5} parent=1 // pred_fallthru
      _
    // Predicated region
    $region22: #{critics1d_forward.5} parent=1 // pred_check
      _
    $region23: #{critics1d_forward.5} parent=1 // pred_check_branch
      %24 = sbr.rel (0) target = $region25
    $region24: #{critics1d_forward.5} parent=1 // pred_region
      %26 = vsyncadd [#allocation3], 0
      %s27 = sshll.u32 %s5, 4
      %s28 = int_to_ptr.hbm [resolvable:$true] %s27
      %s29 = sshll.u32 [#allocation2], 4
      %s30 = int_to_ptr.vmem [resolvable:$true] %s29
      %35 = dma.hbm_to_vmem [thread:$0]  %s28, 1024, %s30, [#allocation3], 64, 64, 4
    $region25: #{critics1d_forward.5} parent=1 // pred_fallthru
      _
    // Predicated region
    $region26: #{critics1d_forward.5} parent=1 // pred_check
      _
    $region27: #{critics1d_forward.5} parent=1 // pred_check_branch
      %37 = sbr.rel (0) target = $region29
    $region28: #{critics1d_forward.5} parent=1 // pred_region
      _
    $region29: #{critics1d_forward.5} parent=1 // pred_fallthru
      _
    // Predicated region
    $region30: #{critics1d_forward.5} parent=1 // pred_check
      _
    $region31: #{critics1d_forward.5} parent=1 // pred_check_branch
      %39 = sbr.rel (0) target = $region33
    $region32: #{critics1d_forward.5} parent=1 // pred_region
      %41 = dma.done [#allocation3], 1024
    $region33: #{critics1d_forward.5} parent=1 // pred_fallthru
      _
    %v42 = vld [vmem:[%s0] sm:$0xf]
    %v43 = vld [vmem:[%s1] sm:$0xf]
    %v44 = vld [vmem:[%s1 + $0x4] sm:$0xf]
    %v45 = vld [vmem:[%s1 + $0x8] sm:$0xf]
    %v46 = vld [vmem:[%s1 + $0xc] sm:$0xf]
    %v47 = vld [vmem:[%s1 + $0x10] sm:$0xf]
    %v48 = vld [vmem:[%s1 + $0x14] sm:$0xf]
    %v49 = vld [vmem:[%s1 + $0x18] sm:$0xf]
    %v50 = vld [vmem:[%s1 + $0x1c] sm:$0xf]
    %v51 = vld [vmem:[%s1 + $0x20] sm:$0xf]
    %v52 = vld [vmem:[%s1 + $0x24] sm:$0xf]
    %v53 = vld [vmem:[%s1 + $0x28] sm:$0xf]
    %v54 = vld [vmem:[%s1 + $0x2c] sm:$0xf]
    %v55 = vld [vmem:[%s1 + $0x30] sm:$0xf]
    %v56 = vld [vmem:[%s1 + $0x34] sm:$0xf]
    %v57 = vld [vmem:[%s1 + $0x38] sm:$0xf]
    %v58 = vld [vmem:[%s1 + $0x3c] sm:$0xf]
    %v59 = vld [vmem:[%s2] sm:$0x1]
    %v61 = vperm.slane %v59, 0
    %v79 = vunpack.c.l.b16 %v43
    %v80 = vunpack.c.l.b16 %v44
    %v81 = vunpack.c.l.b16 %v45
    %v82 = vunpack.c.l.b16 %v46
    %v83 = vunpack.c.l.b16 %v47
    %v84 = vunpack.c.l.b16 %v48
    %v85 = vunpack.c.l.b16 %v49
    %v86 = vunpack.c.l.b16 %v50
    %v87 = vunpack.c.l.b16 %v51
    %v88 = vunpack.c.l.b16 %v52
    %v89 = vunpack.c.l.b16 %v53
    %v90 = vunpack.c.l.b16 %v54
    %v91 = vunpack.c.l.b16 %v55
    %v92 = vunpack.c.l.b16 %v56
    %v93 = vunpack.c.l.b16 %v57
    %v94 = vunpack.c.l.b16 %v58
    %v95 = vpack.c.b16 %v80, %v79
    %v96 = vpack.c.b16 %v82, %v81
    %v97 = vpack.c.b16 %v84, %v83
    %v98 = vpack.c.b16 %v86, %v85
    %v99 = vpack.c.b16 %v88, %v87
    %v100 = vpack.c.b16 %v90, %v89
    %v101 = vpack.c.b16 %v92, %v91
    %v102 = vpack.c.b16 %v94, %v93
    %111 = vmatpush.bf16.msra.mxu0 %v102
    %112 = vmatpush.bf16.msra.mxu0 %v101
    %113 = vmatpush.bf16.msra.mxu0 %v100
    %114 = vmatpush.bf16.msra.mxu0 %v99
    %115 = vmatpush.bf16.msra.mxu0 %v98
    %116 = vmatpush.bf16.msra.mxu0 %v97
    %117 = vmatpush.bf16.msra.mxu0 %v96
    %118 = vmatpush.bf16.msra.mxu0 %v95
    %119 = vmatmul.bf16.gmra.mxu0 %v42
    %v120 = vpop.f32.mrf.mxu0
    %v121 = vadd.f32 %v61, %v120
    %v122 = vpop.f32.mrf.mxu0
    %123 = vdwg.mxu0
    %vm124 = vcmp.gt.f32.partialorder %v121, 0.0
    %v125 = vmul.f32 %v121, 0.2
    %v126 = vsel %vm124, %v121, %v125
    %v127 = vpack.c.bf16 %v126, %v126
    %v128 = vld [vmem:[%s3] sm:$0xf]
    %v129 = vld [vmem:[%s3 + $0x4] sm:$0xf]
    %v130 = vld [vmem:[%s3 + $0x8] sm:$0xf]
    %v131 = vld [vmem:[%s3 + $0xc] sm:$0xf]
    %v132 = vld [vmem:[%s3 + $0x10] sm:$0xf]
    %v133 = vld [vmem:[%s3 + $0x14] sm:$0xf]
    %v134 = vld [vmem:[%s3 + $0x18] sm:$0xf]
    %v135 = vld [vmem:[%s3 + $0x1c] sm:$0xf]
    %v136 = vld [vmem:[%s3 + $0x20] sm:$0xf]
    %v137 = vld [vmem:[%s3 + $0x24] sm:$0xf]
    %v138 = vld [vmem:[%s3 + $0x28] sm:$0xf]
    %v139 = vld [vmem:[%s3 + $0x2c] sm:$0xf]
    %v140 = vld [vmem:[%s3 + $0x30] sm:$0xf]
    %v141 = vld [vmem:[%s3 + $0x34] sm:$0xf]
    %v142 = vld [vmem:[%s3 + $0x38] sm:$0xf]
    %v143 = vld [vmem:[%s3 + $0x3c] sm:$0xf]
    %v144 = vld [vmem:[%s4] sm:$0x1]
    %v146 = vperm.slane %v144, 0
    %v164 = vunpack.c.l.b16 %v128
    %v165 = vunpack.c.l.b16 %v129
    %v166 = vunpack.c.l.b16 %v130
    %v167 = vunpack.c.l.b16 %v131
    %v168 = vunpack.c.l.b16 %v132
    %v169 = vunpack.c.l.b16 %v133
    %v170 = vunpack.c.l.b16 %v134
    %v171 = vunpack.c.l.b16 %v135
    %v172 = vunpack.c.l.b16 %v136
    %v173 = vunpack.c.l.b16 %v137
    %v174 = vunpack.c.l.b16 %v138
    %v175 = vunpack.c.l.b16 %v139
    %v176 = vunpack.c.l.b16 %v140
    %v177 = vunpack.c.l.b16 %v141
    %v178 = vunpack.c.l.b16 %v142
    %v179 = vunpack.c.l.b16 %v143
    %v180 = vpack.c.b16 %v165, %v164
    %v181 = vpack.c.b16 %v167, %v166
    %v182 = vpack.c.b16 %v169, %v168
    %v183 = vpack.c.b16 %v171, %v170
    %v184 = vpack.c.b16 %v173, %v172
    %v185 = vpack.c.b16 %v175, %v174
    %v186 = vpack.c.b16 %v177, %v176
    %v187 = vpack.c.b16 %v179, %v178
    %196 = vmatpush.bf16.msra.mxu0 %v187
    %197 = vmatpush.bf16.msra.mxu0 %v186
    %198 = vmatpush.bf16.msra.mxu0 %v185
    %199 = vmatpush.bf16.msra.mxu0 %v184
    %200 = vmatpush.bf16.msra.mxu0 %v183
    %201 = vmatpush.bf16.msra.mxu0 %v182
    %202 = vmatpush.bf16.msra.mxu0 %v181
    %203 = vmatpush.bf16.msra.mxu0 %v180
    %204 = vmatmul.bf16.gmra.mxu0 %v127
    %v205 = vpop.f32.mrf.mxu0
    %v206 = vadd.f32 %v146, %v205
    %v207 = vpop.f32.mrf.mxu0
    %208 = vdwg.mxu0
    %vm209 = vcmp.gt.f32.partialorder %v206, 0.0
    %v210 = vmul.f32 %v206, 0.2
    %v211 = vsel %vm209, %v206, %v210
    %v212 = vpack.c.bf16 %v211, %v211
    %v213 = vld [vmem:[#allocation2] sm:$0xf]
    %v214 = vld [vmem:[#allocation2 + $0x4] sm:$0xf]
    %v215 = vld [vmem:[#allocation2 + $0x8] sm:$0xf]
    %v216 = vld [vmem:[#allocation2 + $0xc] sm:$0xf]
    %v217 = vld [vmem:[#allocation2 + $0x10] sm:$0xf]
    %v218 = vld [vmem:[#allocation2 + $0x14] sm:$0xf]
    %v219 = vld [vmem:[#allocation2 + $0x18] sm:$0xf]
    %v220 = vld [vmem:[#allocation2 + $0x1c] sm:$0xf]
    %v221 = vld [vmem:[#allocation2 + $0x20] sm:$0xf]
    %v222 = vld [vmem:[#allocation2 + $0x24] sm:$0xf]
    %v223 = vld [vmem:[#allocation2 + $0x28] sm:$0xf]
    %v224 = vld [vmem:[#allocation2 + $0x2c] sm:$0xf]
    %v225 = vld [vmem:[#allocation2 + $0x30] sm:$0xf]
    %v226 = vld [vmem:[#allocation2 + $0x34] sm:$0xf]
    %v227 = vld [vmem:[#allocation2 + $0x38] sm:$0xf]
    %v228 = vld [vmem:[#allocation2 + $0x3c] sm:$0xf]
    %v229 = vld [vmem:[%s6] sm:$0x1]
    %v231 = vperm.slane %v229, 0
    %v249 = vunpack.c.l.b16 %v213
    %v250 = vunpack.c.l.b16 %v214
    %v251 = vunpack.c.l.b16 %v215
    %v252 = vunpack.c.l.b16 %v216
    %v253 = vunpack.c.l.b16 %v217
    %v254 = vunpack.c.l.b16 %v218
    %v255 = vunpack.c.l.b16 %v219
    %v256 = vunpack.c.l.b16 %v220
    %v257 = vunpack.c.l.b16 %v221
    %v258 = vunpack.c.l.b16 %v222
    %v259 = vunpack.c.l.b16 %v223
    %v260 = vunpack.c.l.b16 %v224
    %v261 = vunpack.c.l.b16 %v225
    %v262 = vunpack.c.l.b16 %v226
    %v263 = vunpack.c.l.b16 %v227
    %v264 = vunpack.c.l.b16 %v228
    %v265 = vpack.c.b16 %v250, %v249
    %v266 = vpack.c.b16 %v252, %v251
    %v267 = vpack.c.b16 %v254, %v253
    %v268 = vpack.c.b16 %v256, %v255
    %v269 = vpack.c.b16 %v258, %v257
    %v270 = vpack.c.b16 %v260, %v259
    %v271 = vpack.c.b16 %v262, %v261
    %v272 = vpack.c.b16 %v264, %v263
    %281 = vmatpush.bf16.msra.mxu0 %v272
    %282 = vmatpush.bf16.msra.mxu0 %v271
    %283 = vmatpush.bf16.msra.mxu0 %v270
    %284 = vmatpush.bf16.msra.mxu0 %v269
    %285 = vmatpush.bf16.msra.mxu0 %v268
    %286 = vmatpush.bf16.msra.mxu0 %v267
    %287 = vmatpush.bf16.msra.mxu0 %v266
    %288 = vmatpush.bf16.msra.mxu0 %v265
    %289 = vmatmul.bf16.gmra.mxu0 %v212
    %v290 = vpop.f32.mrf.mxu0
    %v291 = vadd.f32 %v231, %v290
    %v292 = vpop.f32.mrf.mxu0
    %293 = vdwg.mxu0
    %294 = vst [vmem:[%s7] sm:$0xff] %v291
    // Predicated region
    $region34: #{critics1d_forward.5} parent=1 // pred_check
      _
    $region35: #{critics1d_forward.5} parent=1 // pred_check_branch
      %296 = sbr.rel (0) target = $region37
    $region36: #{critics1d_forward.5} parent=1 // pred_region
      _
    $region37: #{critics1d_forward.5} parent=1 // pred_fallthru
      _
    // Predicated region
    $region38: #{critics1d_forward.5} parent=1 // pred_check
      _
    $region39: #{critics1d_forward.5} parent=1 // pred_check_branch
      %298 = sbr.rel (0) target = $region41
    $region40: #{critics1d_forward.5} parent=1 // pred_region
      _
    $region41: #{critics1d_forward.5} parent=1 // pred_fallthru
      _
    %299 = vsyncpa [#allocation3], 1

</llo_original>
